<compile_context>
chip_gen: v7x
topology: tpu7x:2x2x1
jax: 0.10.0
libtpu: 0.0.40
codegen_flags: <defaults>
</compile_context>

<pallas_src>
import functools

import jax
import jax.numpy as jnp
from jax.experimental import pallas as pl
from jax.experimental.pallas import tpu as pltpu


def mlp_kernel(x_ref, w1_ref, b1_ref, w2_ref, b2_ref, w3_ref, b3_ref, o_ref,
               *, bf16_elementwise):
    # Hot path: bf16 matmul (f32 acc) -> bias add (f32) -> tanh -> bf16 -> ...
    x = x_ref[...].astype(jnp.bfloat16)

    h = jnp.dot(x, w1_ref[...], preferred_element_type=jnp.float32) + b1_ref[...]
    if bf16_elementwise:
        h = jnp.tanh(h.astype(jnp.bfloat16))       # bf16 VPU/EUP (v6e/v7x)
    else:
        h = jnp.tanh(h).astype(jnp.bfloat16)       # f32 EUP (v5e has no bf16 path)

    h = jnp.dot(h, w2_ref[...], preferred_element_type=jnp.float32) + b2_ref[...]
    if bf16_elementwise:
        h = jnp.tanh(h.astype(jnp.bfloat16))
    else:
        h = jnp.tanh(h).astype(jnp.bfloat16)

    y = jnp.dot(h, w3_ref[...], preferred_element_type=jnp.float32) + b3_ref[...]
    o_ref[...] = y.astype(o_ref.dtype)


def _device_kind():
    try:
        return jax.devices()[0].device_kind.lower()
    except Exception:  # pragma: no cover - defensive (e.g. odd backends)
        return ""


def basic_mlp_pallas(x, w1, b1, w2, b2, w3, b3, *, tile_b=None):
    """x: (B, D) f32. Weights expected pre-cast to bf16 (D_in, D_out); biases f32 (1, D)."""
    B, D = x.shape
    kind = _device_kind()
    two_tensorcores = any(t in kind for t in ("v4", "v5p", "v7"))
    bf16_elementwise = any(t in kind for t in ("v6", "v7"))

    # Per-generation batch tiling: one big tile on single-TC chips, a 2-way
    # split (one tile per core) on 2-TC chips.
    if tile_b is None:
        if two_tensorcores and B % 16 == 0:
            tile_b = B // 2
        else:
            tile_b = B
    tile_b = min(tile_b, B)
    assert B % tile_b == 0, "batch must be divisible by tile_b"
    assert tile_b == B or tile_b % 8 == 0, "tile_b must be a multiple of 8 (sublane rule)"
    grid = (B // tile_b,)

    # Contract: weights arrive bf16 (cast hoisted to init). Guard cast only for
    # robustness; callers should NOT rely on it in a hot loop.
    if w1.dtype != jnp.bfloat16:
        w1, w2, w3 = (w.astype(jnp.bfloat16) for w in (w1, w2, w3))
    if b1.dtype != jnp.float32:
        b1, b2, b3 = (b.astype(jnp.float32) for b in (b1, b2, b3))

    x_spec = pl.BlockSpec((tile_b, D), lambda i: (i, 0))
    o_spec = pl.BlockSpec((tile_b, D), lambda i: (i, 0))
    # Grid-invariant operands: single resident VMEM copy (no double-buffering).
    res_spec = pl.BlockSpec(memory_space=pltpu.MemorySpace.VMEM)

    # VMEM budget: resident bf16 weights + f32 biases, double-buffered x/o
    # tiles, plus intermediates/headroom. Clamp under v7x's 64 MiB physical.
    weight_bytes = 3 * D * D * 2 + 3 * D * 4
    stream_bytes = 2 * (tile_b * D * 4) + 2 * (tile_b * D * 4)   # x + o, 2 bufs each
    interm_bytes = 4 * tile_b * D * 4                            # f32/bf16 temps, slack
    vmem_limit = int(min(max(weight_bytes + stream_bytes + interm_bytes + (2 << 20),
                             16 << 20), 60 << 20))

    cost = pl.CostEstimate(
        flops=3 * 2 * B * D * D,
        transcendentals=2 * B * D,
        bytes_accessed=(B * D * 4            # x (f32 in)
                        + 3 * D * D * 2      # weights (bf16)
                        + 3 * D * 4          # biases (f32)
                        + B * D * 4),        # output (f32)
    )

    kernel = functools.partial(mlp_kernel, bf16_elementwise=bf16_elementwise)

    return pl.pallas_call(
        kernel,
        out_shape=jax.ShapeDtypeStruct((B, D), x.dtype),
        grid_spec=pltpu.PrefetchScalarGridSpec(
            num_scalar_prefetch=0,
            grid=grid,
            in_specs=[x_spec, res_spec, res_spec, res_spec,
                      res_spec, res_spec, res_spec],
            out_specs=o_spec,
        ),
        compiler_params=pltpu.CompilerParams(
            dimension_semantics=("parallel",),
            vmem_limit_bytes=vmem_limit,
        ),
        cost_estimate=cost,
    )(x, w1, b1, w2, b2, w3, b3)


def init_linear(key, d_in, d_out):
    # Mimic PyTorch nn.Linear default init: U(-1/sqrt(in), 1/sqrt(in)).
    kw, kb = jax.random.split(key)
    bound = 1.0 / jnp.sqrt(d_in)
    # Stored already transposed: (d_in, d_out) so the kernel does x @ W.
    w = jax.random.uniform(kw, (d_in, d_out), jnp.float32, -bound, bound)
    b = jax.random.uniform(kb, (1, d_out), jnp.float32, -bound, bound)
    return w, b


def reference(x, w1, b1, w2, b2, w3, b3):
    h = jnp.tanh(x @ w1 + b1)
    h = jnp.tanh(h @ w2 + b2)
    return h @ w3 + b3


if __name__ == "__main__":
    # Small shapes consistent with the module (square Linear layers): D=256
    # keeps MXU-friendly 128-multiple dims; B=512 gives either one full tile
    # (single-TC chips) or a clean 2x256 split on 2-TC chips.
    B, D = 512, 256
    key = jax.random.PRNGKey(0)
    kx, k1, k2, k3 = jax.random.split(key, 4)

    x = jax.random.normal(kx, (B, D), jnp.float32)
    w1, b1 = init_linear(k1, D, D)
    w2, b2 = init_linear(k2, D, D)
    w3, b3 = init_linear(k3, D, D)

    # Hoisted, one-time weight cast (the kernel's weight contract is bf16).
    w1b, w2b, w3b = (jax.block_until_ready(w.astype(jnp.bfloat16))
                     for w in (w1, w2, w3))

    out = jax.block_until_ready(basic_mlp_pallas(x, w1b, b1, w2b, b2, w3b, b3))

    ref = reference(x, w1, b1, w2, b2, w3, b3)
    assert out.shape == (B, D)
    # bf16 MXU operands (f32 accumulation) vs f32 reference -> loosened tolerance.
    assert jnp.allclose(out, ref, atol=5e-2, rtol=5e-2)

    print("KERNEL_OK")
</pallas_src>

<mosaic_0001>
module attributes {stable_mosaic.version = 11 : i64} {
  func.func @mlp_kernel(%arg0: i32, %arg1: memref<512x256xf32, #tpu.memory_space<vmem>>, %arg2: memref<256x256xbf16, #tpu.memory_space<vmem>>, %arg3: memref<1x256xf32, #tpu.memory_space<vmem>>, %arg4: memref<256x256xbf16, #tpu.memory_space<vmem>>, %arg5: memref<1x256xf32, #tpu.memory_space<vmem>>, %arg6: memref<256x256xbf16, #tpu.memory_space<vmem>>, %arg7: memref<1x256xf32, #tpu.memory_space<vmem>>, %arg8: memref<512x256xf32, #tpu.memory_space<vmem>>) attributes {dimension_semantics = [#tpu.dimension_semantics<parallel>], iteration_bounds = array<i64: 1>, scalar_prefetch = 0 : i64, scratch_operands = 0 : i64, tpu.core_type = #tpu.core_type<tc>, window_params = [{transform_indices = @transform_0, window_bounds = array<i64: 512, 256>}, {pipeline_mode = #tpu.pipeline_mode<synchronous>, transform_indices = @transform_1, window_bounds = array<i64: 256, 256>}, {pipeline_mode = #tpu.pipeline_mode<synchronous>, transform_indices = @transform_2, window_bounds = array<i64: 1, 256>}, {pipeline_mode = #tpu.pipeline_mode<synchronous>, transform_indices = @transform_3, window_bounds = array<i64: 256, 256>}, {pipeline_mode = #tpu.pipeline_mode<synchronous>, transform_indices = @transform_4, window_bounds = array<i64: 1, 256>}, {pipeline_mode = #tpu.pipeline_mode<synchronous>, transform_indices = @transform_5, window_bounds = array<i64: 256, 256>}, {pipeline_mode = #tpu.pipeline_mode<synchronous>, transform_indices = @transform_6, window_bounds = array<i64: 1, 256>}, {transform_indices = @transform_7, window_bounds = array<i64: 512, 256>}]} {
    %c0 = arith.constant 0 : index
    %c0_0 = arith.constant 0 : index
    %0 = vector.load %arg1[%c0, %c0_0] : memref<512x256xf32, #tpu.memory_space<vmem>>, vector<512x256xf32>
    %1 = arith.truncf %0 : vector<512x256xf32> to vector<512x256xbf16>
    %c0_1 = arith.constant 0 : index
    %c0_2 = arith.constant 0 : index
    %2 = vector.load %arg2[%c0_1, %c0_2] : memref<256x256xbf16, #tpu.memory_space<vmem>>, vector<256x256xbf16>
    %cst = arith.constant dense<0.000000e+00> : vector<512x256xf32>
    %3 = tpu.matmul %1, %2, %cst {dimension_numbers = #tpu.dot_dimension_numbers<[1], [0], [0], [1], [0, 0, 1, 1], [], []>} : vector<512x256xbf16>, vector<256x256xbf16>, vector<512x256xf32> -> vector<512x256xf32>
    %c0_3 = arith.constant 0 : index
    %c0_4 = arith.constant 0 : index
    %4 = vector.load %arg3[%c0_3, %c0_4] : memref<1x256xf32, #tpu.memory_space<vmem>>, vector<1x256xf32>
    %5 = vector.broadcast %4 : vector<1x256xf32> to vector<512x256xf32>
    %6 = arith.addf %3, %5 : vector<512x256xf32>
    %7 = math.tanh %6 : vector<512x256xf32>
    %8 = arith.truncf %7 : vector<512x256xf32> to vector<512x256xbf16>
    %c0_5 = arith.constant 0 : index
    %c0_6 = arith.constant 0 : index
    %9 = vector.load %arg4[%c0_5, %c0_6] : memref<256x256xbf16, #tpu.memory_space<vmem>>, vector<256x256xbf16>
    %cst_7 = arith.constant dense<0.000000e+00> : vector<512x256xf32>
    %10 = tpu.matmul %8, %9, %cst_7 {dimension_numbers = #tpu.dot_dimension_numbers<[1], [0], [0], [1], [0, 0, 1, 1], [], []>} : vector<512x256xbf16>, vector<256x256xbf16>, vector<512x256xf32> -> vector<512x256xf32>
    %c0_8 = arith.constant 0 : index
    %c0_9 = arith.constant 0 : index
    %11 = vector.load %arg5[%c0_8, %c0_9] : memref<1x256xf32, #tpu.memory_space<vmem>>, vector<1x256xf32>
    %12 = vector.broadcast %11 : vector<1x256xf32> to vector<512x256xf32>
    %13 = arith.addf %10, %12 : vector<512x256xf32>
    %14 = math.tanh %13 : vector<512x256xf32>
    %15 = arith.truncf %14 : vector<512x256xf32> to vector<512x256xbf16>
    %c0_10 = arith.constant 0 : index
    %c0_11 = arith.constant 0 : index
    %16 = vector.load %arg6[%c0_10, %c0_11] : memref<256x256xbf16, #tpu.memory_space<vmem>>, vector<256x256xbf16>
    %cst_12 = arith.constant dense<0.000000e+00> : vector<512x256xf32>
    %17 = tpu.matmul %15, %16, %cst_12 {dimension_numbers = #tpu.dot_dimension_numbers<[1], [0], [0], [1], [0, 0, 1, 1], [], []>} : vector<512x256xbf16>, vector<256x256xbf16>, vector<512x256xf32> -> vector<512x256xf32>
    %c0_13 = arith.constant 0 : index
    %c0_14 = arith.constant 0 : index
    %18 = vector.load %arg7[%c0_13, %c0_14] : memref<1x256xf32, #tpu.memory_space<vmem>>, vector<1x256xf32>
    %19 = vector.broadcast %18 : vector<1x256xf32> to vector<512x256xf32>
    %20 = arith.addf %17, %19 : vector<512x256xf32>
    %c0_15 = arith.constant 0 : index
    %c0_16 = arith.constant 0 : index
    %21 = vector.load %arg8[%c0_15, %c0_16] : memref<512x256xf32, #tpu.memory_space<vmem>>, vector<512x256xf32>
    tpu.vector_store %arg8[%c0_15, %c0_16], %20 {strides = array<i32>} : memref<512x256xf32, #tpu.memory_space<vmem>>, vector<512x256xf32>,
    return
  }
  func.func @transform_0(%arg0: i32) -> (i32, i32) {
    %c0_i32 = arith.constant 0 : i32
    %c0_i32_0 = arith.constant 0 : i32
    return %arg0, %c0_i32 : i32, i32
  }
  func.func @transform_1(%arg0: i32) -> (i32, i32) {
    %c0_i32 = arith.constant 0 : i32
    %c0_i32_0 = arith.constant 0 : i32
    %c0_i32_1 = arith.constant 0 : i32
    return %c0_i32, %c0_i32_0 : i32, i32
  }
  func.func @transform_2(%arg0: i32) -> (i32, i32) {
    %c0_i32 = arith.constant 0 : i32
    %c0_i32_0 = arith.constant 0 : i32
    %c0_i32_1 = arith.constant 0 : i32
    return %c0_i32, %c0_i32_0 : i32, i32
  }
  func.func @transform_3(%arg0: i32) -> (i32, i32) {
    %c0_i32 = arith.constant 0 : i32
    %c0_i32_0 = arith.constant 0 : i32
    %c0_i32_1 = arith.constant 0 : i32
    return %c0_i32, %c0_i32_0 : i32, i32
  }
  func.func @transform_4(%arg0: i32) -> (i32, i32) {
    %c0_i32 = arith.constant 0 : i32
    %c0_i32_0 = arith.constant 0 : i32
    %c0_i32_1 = arith.constant 0 : i32
    return %c0_i32, %c0_i32_0 : i32, i32
  }
  func.func @transform_5(%arg0: i32) -> (i32, i32) {
    %c0_i32 = arith.constant 0 : i32
    %c0_i32_0 = arith.constant 0 : i32
    %c0_i32_1 = arith.constant 0 : i32
    return %c0_i32, %c0_i32_0 : i32, i32
  }
  func.func @transform_6(%arg0: i32) -> (i32, i32) {
    %c0_i32 = arith.constant 0 : i32
    %c0_i32_0 = arith.constant 0 : i32
    %c0_i32_1 = arith.constant 0 : i32
    return %c0_i32, %c0_i32_0 : i32, i32
  }
  func.func @transform_7(%arg0: i32) -> (i32, i32) {
    %c0_i32 = arith.constant 0 : i32
    %c0_i32_0 = arith.constant 0 : i32
    return %arg0, %c0_i32 : i32, i32
  }
}

</mosaic_0001>

<llo_original>
// kernel: tpu_custom_call.1
$region0: #{tpu_custom_call.1}
  #allocation0 [shape = 'u32[]', space=smem, size = 0x4, offset = 0x4, fixed_abs, tag = 'smem constant byte address 0x4 - core index']
  #allocation1 [shape = 'u32[144,128]{1,0:T(1,128)}', space=vmem, size = 0x12000, scoped, tag = 'internal scratch']
  %s0 = inlined_call_operand.hbm [shape: f32[512,256], index: 0, kind: input, shape index: {}]
  %s1 = inlined_call_operand.hbm [shape: bf16[256,256], index: 1, kind: input, shape index: {}]
  %s2 = inlined_call_operand.vmem [shape: f32[1,256], index: 2, kind: input, shape index: {}]
  %s3 = inlined_call_operand.hbm [shape: bf16[256,256], index: 3, kind: input, shape index: {}]
  %s4 = inlined_call_operand.vmem [shape: f32[1,256], index: 4, kind: input, shape index: {}]
  %s5 = inlined_call_operand.hbm [shape: bf16[256,256], index: 5, kind: input, shape index: {}]
  %s6 = inlined_call_operand.vmem [shape: f32[1,256], index: 6, kind: input, shape index: {}]
  %s7 = inlined_call_operand.hbm [shape: f32[512,256], index: 7, kind: output, shape index: {}]
  %s8 = sld [smem:[#allocation0]]
  $region54: #{tpu_custom_call.1} parent=0
    _
  %s10 = ssub.s32 1, %s8
  %s11 = scalar_select 0, %s10, %s8
  $region1: #{tpu_custom_call.1} parent=0
    #allocation2 [shape = 'u8[524288]{0}', space=vmem, size = 0x80000, scoped, tag = 'input window, operand 0, single buffered']
    #allocation3 [shape = 's32[1]{0}', space=sflag, size = 0x4, scoped, tag = 'scoped memory for tpu_custom_call.1']
    #allocation4 [shape = 's32[1]{0}', space=sflag, size = 0x4, scoped, tag = 'scoped memory for tpu_custom_call.1']
    #allocation5 [shape = 'u8[131072]{0}', space=vmem, size = 0x20000, scoped, tag = 'input window, operand 1, single buffered']
    #allocation6 [shape = 's32[1]{0}', space=sflag, size = 0x4, scoped, tag = 'scoped memory for tpu_custom_call.1']
    #allocation7 [shape = 'u8[131072]{0}', space=vmem, size = 0x20000, scoped, tag = 'input window, operand 3, single buffered']
    #allocation8 [shape = 'u8[131072]{0}', space=vmem, size = 0x20000, scoped, tag = 'input window, operand 5, single buffered']
    #allocation9 [shape = 's32[1]{0}', space=sflag, size = 0x4, scoped, tag = 'scoped memory for tpu_custom_call.1']
    #allocation10 [shape = 'u8[524288]{0}', space=vmem, size = 0x80000, scoped, tag = 'output window, operand 0, single buffered']
    %12 = vsyncpa [#allocation3], 0
    %13 = vsyncpa [#allocation6], 0
    %14 = vsyncpa [#allocation9], 0
    %15 = vsyncpa [#allocation4], 0
    // Predicated region
    $region2: #{tpu_custom_call.1} parent=1 // pred_check
      _
    $region3: #{tpu_custom_call.1} parent=1 // pred_check_branch
      %17 = sbr.rel (0) target = $region5
    $region4: #{tpu_custom_call.1} parent=1 // pred_region
      %s19 = ssub.s32 16384, 16384
      %20 = vsyncadd [#allocation3], %s19
      %s21 = sshll.u32 [#allocation2], 4
      %s22 = int_to_ptr.vmem [resolvable:$true] %s21
      %27 = dma.hbm_to_vmem [thread:$0]  %s0, 16384, %s22, [#allocation3], 256, 256, 16
    $region5: #{tpu_custom_call.1} parent=1 // pred_fallthru
      _
    // Predicated region
    $region6: #{tpu_custom_call.1} parent=1 // pred_check
      _
    $region7: #{tpu_custom_call.1} parent=1 // pred_check_branch
      %29 = sbr.rel (0) target = $region9
    $region8: #{tpu_custom_call.1} parent=1 // pred_region
      %s31 = ssub.s32 4096, 4096
      %32 = vsyncadd [#allocation6], %s31
      %s33 = sshll.u32 [#allocation5], 4
      %s34 = int_to_ptr.vmem [resolvable:$true] %s33
      %39 = dma.hbm_to_vmem [thread:$0]  %s1, 4096, %s34, [#allocation6], 128, 128, 8
    $region9: #{tpu_custom_call.1} parent=1 // pred_fallthru
      _
    // Predicated region
    $region10: #{tpu_custom_call.1} parent=1 // pred_check
      _
    $region11: #{tpu_custom_call.1} parent=1 // pred_check_branch
      %41 = sbr.rel (0) target = $region13
    $region12: #{tpu_custom_call.1} parent=1 // pred_region
      _
    $region13: #{tpu_custom_call.1} parent=1 // pred_fallthru
      _
    // Predicated region
    $region14: #{tpu_custom_call.1} parent=1 // pred_check
      _
    $region15: #{tpu_custom_call.1} parent=1 // pred_check_branch
      %43 = sbr.rel (0) target = $region17
    $region16: #{tpu_custom_call.1} parent=1 // pred_region
      %s45 = ssub.s32 4096, 4096
      %46 = vsyncadd [#allocation6], %s45
      %s47 = sshll.u32 [#allocation7], 4
      %s48 = int_to_ptr.vmem [resolvable:$true] %s47
      %53 = dma.hbm_to_vmem [thread:$0]  %s3, 4096, %s48, [#allocation6], 128, 128, 8
    $region17: #{tpu_custom_call.1} parent=1 // pred_fallthru
      _
    // Predicated region
    $region18: #{tpu_custom_call.1} parent=1 // pred_check
      _
    $region19: #{tpu_custom_call.1} parent=1 // pred_check_branch
      %55 = sbr.rel (0) target = $region21
    $region20: #{tpu_custom_call.1} parent=1 // pred_region
      _
    $region21: #{tpu_custom_call.1} parent=1 // pred_fallthru
      _
    // Predicated region
    $region22: #{tpu_custom_call.1} parent=1 // pred_check
      _
    $region23: #{tpu_custom_call.1} parent=1 // pred_check_branch
      %57 = sbr.rel (0) target = $region25
    $region24: #{tpu_custom_call.1} parent=1 // pred_region
      %s59 = ssub.s32 4096, 4096
      %60 = vsyncadd [#allocation9], %s59
      %s61 = sshll.u32 [#allocation8], 4
      %s62 = int_to_ptr.vmem [resolvable:$true] %s61
      %67 = dma.hbm_to_vmem [thread:$0]  %s5, 4096, %s62, [#allocation9], 128, 128, 8
    $region25: #{tpu_custom_call.1} parent=1 // pred_fallthru
      _
    // Predicated region
    $region26: #{tpu_custom_call.1} parent=1 // pred_check
      _
    $region27: #{tpu_custom_call.1} parent=1 // pred_check_branch
      %69 = sbr.rel (0) target = $region29
    $region28: #{tpu_custom_call.1} parent=1 // pred_region
      _
    $region29: #{tpu_custom_call.1} parent=1 // pred_fallthru
      _
    // Predicated region
    $region30: #{tpu_custom_call.1} parent=1 // pred_check
      _
    $region31: #{tpu_custom_call.1} parent=1 // pred_check_branch
      %71 = sbr.rel (0) target = $region33
    $region32: #{tpu_custom_call.1} parent=1 // pred_region
      %72 = dma.done [#allocation3], 16384
    $region33: #{tpu_custom_call.1} parent=1 // pred_fallthru
      _
    // Predicated region
    $region34: #{tpu_custom_call.1} parent=1 // pred_check
      _
    $region35: #{tpu_custom_call.1} parent=1 // pred_check_branch
      %74 = sbr.rel (0) target = $region37
    $region36: #{tpu_custom_call.1} parent=1 // pred_region
      %75 = dma.done [#allocation6], 4096
    $region37: #{tpu_custom_call.1} parent=1 // pred_fallthru
      _
    // Predicated region
    $region38: #{tpu_custom_call.1} parent=1 // pred_check
      _
    $region39: #{tpu_custom_call.1} parent=1 // pred_check_branch
      %77 = sbr.rel (0) target = $region41
    $region40: #{tpu_custom_call.1} parent=1 // pred_region
      %78 = dma.done [#allocation6], 4096
    $region41: #{tpu_custom_call.1} parent=1 // pred_fallthru
      _
    // Predicated region
    $region42: #{tpu_custom_call.1} parent=1 // pred_check
      _
    $region43: #{tpu_custom_call.1} parent=1 // pred_check_branch
      %80 = sbr.rel (0) target = $region45
    $region44: #{tpu_custom_call.1} parent=1 // pred_region
      %81 = dma.done [#allocation9], 4096
    $region45: #{tpu_custom_call.1} parent=1 // pred_fallthru
      _
    %v82 = vld [vmem:[#allocation2] sm:$0xff]
    %v83 = vld [vmem:[#allocation2 + $0x8] sm:$0xff]
    %v84 = vld [vmem:[#allocation2 + $0x10] sm:$0xff]
    %v85 = vld [vmem:[#allocation2 + $0x18] sm:$0xff]
    %v86 = vld [vmem:[#allocation2 + $0x20] sm:$0xff]
    %v87 = vld [vmem:[#allocation2 + $0x28] sm:$0xff]
    %v88 = vld [vmem:[#allocation2 + $0x30] sm:$0xff]
    %v89 = vld [vmem:[#allocation2 + $0x38] sm:$0xff]
    %v90 = vld [vmem:[#allocation2 + $0x40] sm:$0xff]
    %v91 = vld [vmem:[#allocation2 + $0x48] sm:$0xff]
    %v92 = vld [vmem:[#allocation2 + $0x50] sm:$0xff]
    %v93 = vld [vmem:[#allocation2 + $0x58] sm:$0xff]
    %v94 = vld [vmem:[#allocation2 + $0x60] sm:$0xff]
    %v95 = vld [vmem:[#allocation2 + $0x68] sm:$0xff]
    %v96 = vld [vmem:[#allocation2 + $0x70] sm:$0xff]
    %v97 = vld [vmem:[#allocation2 + $0x78] sm:$0xff]
    %v98 = vld [vmem:[#allocation2 + $0x80] sm:$0xff]
    %v99 = vld [vmem:[#allocation2 + $0x88] sm:$0xff]
    %v100 = vld [vmem:[#allocation2 + $0x90] sm:$0xff]
    %v101 = vld [vmem:[#allocation2 + $0x98] sm:$0xff]
    %v102 = vld [vmem:[#allocation2 + $0xa0] sm:$0xff]
    %v103 = vld [vmem:[#allocation2 + $0xa8] sm:$0xff]
    %v104 = vld [vmem:[#allocation2 + $0xb0] sm:$0xff]
    %v105 = vld [vmem:[#allocation2 + $0xb8] sm:$0xff]
    %v106 = vld [vmem:[#allocation2 + $0xc0] sm:$0xff]
    %v107 = vld [vmem:[#allocation2 + $0xc8] sm:$0xff]
    %v108 = vld [vmem:[#allocation2 + $0xd0] sm:$0xff]
    %v109 = vld [vmem:[#allocation2 + $0xd8] sm:$0xff]
    %v110 = vld [vmem:[#allocation2 + $0xe0] sm:$0xff]
    %v111 = vld [vmem:[#allocation2 + $0xe8] sm:$0xff]
    %v112 = vld [vmem:[#allocation2 + $0xf0] sm:$0xff]
    %v113 = vld [vmem:[#allocation2 + $0xf8] sm:$0xff]
    %v114 = vld [vmem:[#allocation2 + $0x100] sm:$0xff]
    %v115 = vld [vmem:[#allocation2 + $0x108] sm:$0xff]
    %v116 = vld [vmem:[#allocation2 + $0x110] sm:$0xff]
    %v117 = vld [vmem:[#allocation2 + $0x118] sm:$0xff]
    %v118 = vld [vmem:[#allocation2 + $0x120] sm:$0xff]
    %v119 = vld [vmem:[#allocation2 + $0x128] sm:$0xff]
    %v120 = vld [vmem:[#allocation2 + $0x130] sm:$0xff]
    %v121 = vld [vmem:[#allocation2 + $0x138] sm:$0xff]
    %v122 = vld [vmem:[#allocation2 + $0x140] sm:$0xff]
    %v123 = vld [vmem:[#allocation2 + $0x148] sm:$0xff]
    %v124 = vld [vmem:[#allocation2 + $0x150] sm:$0xff]
    %v125 = vld [vmem:[#allocation2 + $0x158] sm:$0xff]
    %v126 = vld [vmem:[#allocation2 + $0x160] sm:$0xff]
    %v127 = vld [vmem:[#allocation2 + $0x168] sm:$0xff]
    %v128 = vld [vmem:[#allocation2 + $0x170] sm:$0xff]
    %v129 = vld [vmem:[#allocation2 + $0x178] sm:$0xff]
    %v130 = vld [vmem:[#allocation2 + $0x180] sm:$0xff]
    %v131 = vld [vmem:[#allocation2 + $0x188] sm:$0xff]
    %v132 = vld [vmem:[#allocation2 + $0x190] sm:$0xff]
    %v133 = vld [vmem:[#allocation2 + $0x198] sm:$0xff]
    %v134 = vld [vmem:[#allocation2 + $0x1a0] sm:$0xff]
    %v135 = vld [vmem:[#allocation2 + $0x1a8] sm:$0xff]
    %v136 = vld [vmem:[#allocation2 + $0x1b0] sm:$0xff]
    %v137 = vld [vmem:[#allocation2 + $0x1b8] sm:$0xff]
    %v138 = vld [vmem:[#allocation2 + $0x1c0] sm:$0xff]
    %v139 = vld [vmem:[#allocation2 + $0x1c8] sm:$0xff]
    %v140 = vld [vmem:[#allocation2 + $0x1d0] sm:$0xff]
    %v141 = vld [vmem:[#allocation2 + $0x1d8] sm:$0xff]
    %v142 = vld [vmem:[#allocation2 + $0x1e0] sm:$0xff]
    %v143 = vld [vmem:[#allocation2 + $0x1e8] sm:$0xff]
    %v144 = vld [vmem:[#allocation2 + $0x1f0] sm:$0xff]
    %v145 = vld [vmem:[#allocation2 + $0x1f8] sm:$0xff]
    %v146 = vld [vmem:[#allocation2 + $0x200] sm:$0xff]
    %v147 = vld [vmem:[#allocation2 + $0x208] sm:$0xff]
    %v148 = vld [vmem:[#allocation2 + $0x210] sm:$0xff]
    %v149 = vld [vmem:[#allocation2 + $0x218] sm:$0xff]
    %v150 = vld [vmem:[#allocation2 + $0x220] sm:$0xff]
    %v151 = vld [vmem:[#allocation2 + $0x228] sm:$0xff]
    %v152 = vld [vmem:[#allocation2 + $0x230] sm:$0xff]
    %v153 = vld [vmem:[#allocation2 + $0x238] sm:$0xff]
    %v154 = vld [vmem:[#allocation2 + $0x240] sm:$0xff]
    %v155 = vld [vmem:[#allocation2 + $0x248] sm:$0xff]
    %v156 = vld [vmem:[#allocation2 + $0x250] sm:$0xff]
    %v157 = vld [vmem:[#allocation2 + $0x258] sm:$0xff]
    %v158 = vld [vmem:[#allocation2 + $0x260] sm:$0xff]
    %v159 = vld [vmem:[#allocation2 + $0x268] sm:$0xff]
    %v160 = vld [vmem:[#allocation2 + $0x270] sm:$0xff]
    %v161 = vld [vmem:[#allocation2 + $0x278] sm:$0xff]
    %v162 = vld [vmem:[#allocation2 + $0x280] sm:$0xff]
    %v163 = vld [vmem:[#allocation2 + $0x288] sm:$0xff]
    %v164 = vld [vmem:[#allocation2 + $0x290] sm:$0xff]
    %v165 = vld [vmem:[#allocation2 + $0x298] sm:$0xff]
    %v166 = vld [vmem:[#allocation2 + $0x2a0] sm:$0xff]
    %v167 = vld [vmem:[#allocation2 + $0x2a8] sm:$0xff]
    %v168 = vld [vmem:[#allocation2 + $0x2b0] sm:$0xff]
    %v169 = vld [vmem:[#allocation2 + $0x2b8] sm:$0xff]
    %v170 = vld [vmem:[#allocation2 + $0x2c0] sm:$0xff]
    %v171 = vld [vmem:[#allocation2 + $0x2c8] sm:$0xff]
    %v172 = vld [vmem:[#allocation2 + $0x2d0] sm:$0xff]
    %v173 = vld [vmem:[#allocation2 + $0x2d8] sm:$0xff]
    %v174 = vld [vmem:[#allocation2 + $0x2e0] sm:$0xff]
    %v175 = vld [vmem:[#allocation2 + $0x2e8] sm:$0xff]
    %v176 = vld [vmem:[#allocation2 + $0x2f0] sm:$0xff]
    %v177 = vld [vmem:[#allocation2 + $0x2f8] sm:$0xff]
    %v178 = vld [vmem:[#allocation2 + $0x300] sm:$0xff]
    %v179 = vld [vmem:[#allocation2 + $0x308] sm:$0xff]
    %v180 = vld [vmem:[#allocation2 + $0x310] sm:$0xff]
    %v181 = vld [vmem:[#allocation2 + $0x318] sm:$0xff]
    %v182 = vld [vmem:[#allocation2 + $0x320] sm:$0xff]
    %v183 = vld [vmem:[#allocation2 + $0x328] sm:$0xff]
    %v184 = vld [vmem:[#allocation2 + $0x330] sm:$0xff]
    %v185 = vld [vmem:[#allocation2 + $0x338] sm:$0xff]
    %v186 = vld [vmem:[#allocation2 + $0x340] sm:$0xff]
    %v187 = vld [vmem:[#allocation2 + $0x348] sm:$0xff]
    %v188 = vld [vmem:[#allocation2 + $0x350] sm:$0xff]
    %v189 = vld [vmem:[#allocation2 + $0x358] sm:$0xff]
    %v190 = vld [vmem:[#allocation2 + $0x360] sm:$0xff]
    %v191 = vld [vmem:[#allocation2 + $0x368] sm:$0xff]
    %v192 = vld [vmem:[#allocation2 + $0x370] sm:$0xff]
    %v193 = vld [vmem:[#allocation2 + $0x378] sm:$0xff]
    %v194 = vld [vmem:[#allocation2 + $0x380] sm:$0xff]
    %v195 = vld [vmem:[#allocation2 + $0x388] sm:$0xff]
    %v196 = vld [vmem:[#allocation2 + $0x390] sm:$0xff]
    %v197 = vld [vmem:[#allocation2 + $0x398] sm:$0xff]
    %v198 = vld [vmem:[#allocation2 + $0x3a0] sm:$0xff]
    %v199 = vld [vmem:[#allocation2 + $0x3a8] sm:$0xff]
    %v200 = vld [vmem:[#allocation2 + $0x3b0] sm:$0xff]
    %v201 = vld [vmem:[#allocation2 + $0x3b8] sm:$0xff]
    %v202 = vld [vmem:[#allocation2 + $0x3c0] sm:$0xff]
    %v203 = vld [vmem:[#allocation2 + $0x3c8] sm:$0xff]
    %v204 = vld [vmem:[#allocation2 + $0x3d0] sm:$0xff]
    %v205 = vld [vmem:[#allocation2 + $0x3d8] sm:$0xff]
    %v206 = vld [vmem:[#allocation2 + $0x3e0] sm:$0xff]
    %v207 = vld [vmem:[#allocation2 + $0x3e8] sm:$0xff]
    %v208 = vld [vmem:[#allocation2 + $0x3f0] sm:$0xff]
    %v209 = vld [vmem:[#allocation2 + $0x3f8] sm:$0xff]
    %v210 = vpack.c.bf16 %v84, %v82
    %v211 = vpack.c.bf16 %v85, %v83
    %v212 = vpack.c.bf16 %v88, %v86
    %v213 = vpack.c.bf16 %v89, %v87
    %v214 = vpack.c.bf16 %v92, %v90
    %v215 = vpack.c.bf16 %v93, %v91
    %v216 = vpack.c.bf16 %v96, %v94
    %v217 = vpack.c.bf16 %v97, %v95
    %v218 = vpack.c.bf16 %v100, %v98
    %v219 = vpack.c.bf16 %v101, %v99
    %v220 = vpack.c.bf16 %v104, %v102
    %v221 = vpack.c.bf16 %v105, %v103
    %v222 = vpack.c.bf16 %v108, %v106
    %v223 = vpack.c.bf16 %v109, %v107
    %v224 = vpack.c.bf16 %v112, %v110
    %v225 = vpack.c.bf16 %v113, %v111
    %v226 = vpack.c.bf16 %v116, %v114
    %v227 = vpack.c.bf16 %v117, %v115
    %v228 = vpack.c.bf16 %v120, %v118
    %v229 = vpack.c.bf16 %v121, %v119
    %v230 = vpack.c.bf16 %v124, %v122
    %v231 = vpack.c.bf16 %v125, %v123
    %v232 = vpack.c.bf16 %v128, %v126
    %v233 = vpack.c.bf16 %v129, %v127
    %v234 = vpack.c.bf16 %v132, %v130
    %v235 = vpack.c.bf16 %v133, %v131
    %v236 = vpack.c.bf16 %v136, %v134
    %v237 = vpack.c.bf16 %v137, %v135
    %v238 = vpack.c.bf16 %v140, %v138
    %v239 = vpack.c.bf16 %v141, %v139
    %v240 = vpack.c.bf16 %v144, %v142
    %v241 = vpack.c.bf16 %v145, %v143
    %v242 = vpack.c.bf16 %v148, %v146
    %v243 = vpack.c.bf16 %v149, %v147
    %v244 = vpack.c.bf16 %v152, %v150
    %v245 = vpack.c.bf16 %v153, %v151
    %v246 = vpack.c.bf16 %v156, %v154
    %v247 = vpack.c.bf16 %v157, %v155
    %v248 = vpack.c.bf16 %v160, %v158
    %v249 = vpack.c.bf16 %v161, %v159
    %v250 = vpack.c.bf16 %v164, %v162
    %v251 = vpack.c.bf16 %v165, %v163
    %v252 = vpack.c.bf16 %v168, %v166
    %v253 = vpack.c.bf16 %v169, %v167
    %v254 = vpack.c.bf16 %v172, %v170
    %v255 = vpack.c.bf16 %v173, %v171
    %v256 = vpack.c.bf16 %v176, %v174
    %v257 = vpack.c.bf16 %v177, %v175
    %v258 = vpack.c.bf16 %v180, %v178
    %v259 = vpack.c.bf16 %v181, %v179
    %v260 = vpack.c.bf16 %v184, %v182
    %v261 = vpack.c.bf16 %v185, %v183
    %v262 = vpack.c.bf16 %v188, %v186
    %v263 = vpack.c.bf16 %v189, %v187
    %v264 = vpack.c.bf16 %v192, %v190
    %v265 = vpack.c.bf16 %v193, %v191
    %v266 = vpack.c.bf16 %v196, %v194
    %v267 = vpack.c.bf16 %v197, %v195
    %v268 = vpack.c.bf16 %v200, %v198
    %v269 = vpack.c.bf16 %v201, %v199
    %v270 = vpack.c.bf16 %v204, %v202
    %v271 = vpack.c.bf16 %v205, %v203
    %v272 = vpack.c.bf16 %v208, %v206
    %v273 = vpack.c.bf16 %v209, %v207
    %v274 = vld [vmem:[#allocation5] sm:$0xff]
    %v275 = vld [vmem:[#allocation5 + $0x8] sm:$0xff]
    %v276 = vld [vmem:[#allocation5 + $0x10] sm:$0xff]
    %v277 = vld [vmem:[#allocation5 + $0x18] sm:$0xff]
    %v278 = vld [vmem:[#allocation5 + $0x20] sm:$0xff]
    %v279 = vld [vmem:[#allocation5 + $0x28] sm:$0xff]
    %v280 = vld [vmem:[#allocation5 + $0x30] sm:$0xff]
    %v281 = vld [vmem:[#allocation5 + $0x38] sm:$0xff]
    %v282 = vld [vmem:[#allocation5 + $0x40] sm:$0xff]
    %v283 = vld [vmem:[#allocation5 + $0x48] sm:$0xff]
    %v284 = vld [vmem:[#allocation5 + $0x50] sm:$0xff]
    %v285 = vld [vmem:[#allocation5 + $0x58] sm:$0xff]
    %v286 = vld [vmem:[#allocation5 + $0x60] sm:$0xff]
    %v287 = vld [vmem:[#allocation5 + $0x68] sm:$0xff]
    %v288 = vld [vmem:[#allocation5 + $0x70] sm:$0xff]
    %v289 = vld [vmem:[#allocation5 + $0x78] sm:$0xff]
    %v290 = vld [vmem:[#allocation5 + $0x80] sm:$0xff]
    %v291 = vld [vmem:[#allocation5 + $0x88] sm:$0xff]
    %v292 = vld [vmem:[#allocation5 + $0x90] sm:$0xff]
    %v293 = vld [vmem:[#allocation5 + $0x98] sm:$0xff]
    %v294 = vld [vmem:[#allocation5 + $0xa0] sm:$0xff]
    %v295 = vld [vmem:[#allocation5 + $0xa8] sm:$0xff]
    %v296 = vld [vmem:[#allocation5 + $0xb0] sm:$0xff]
    %v297 = vld [vmem:[#allocation5 + $0xb8] sm:$0xff]
    %v298 = vld [vmem:[#allocation5 + $0xc0] sm:$0xff]
    %v299 = vld [vmem:[#allocation5 + $0xc8] sm:$0xff]
    %v300 = vld [vmem:[#allocation5 + $0xd0] sm:$0xff]
    %v301 = vld [vmem:[#allocation5 + $0xd8] sm:$0xff]
    %v302 = vld [vmem:[#allocation5 + $0xe0] sm:$0xff]
    %v303 = vld [vmem:[#allocation5 + $0xe8] sm:$0xff]
    %v304 = vld [vmem:[#allocation5 + $0xf0] sm:$0xff]
    %v305 = vld [vmem:[#allocation5 + $0xf8] sm:$0xff]
    %v306 = vld [vmem:[%s2] sm:$0x3]
    %v308 = vlaneseq
    %v309 = vshrl.u32 %v308, 7
    %v310 = vsub.s32 0, %v309
    %v311 = vrot.slane %v306, %v310
    %v312 = vlaneseq
    %v313 = vshrl.u32 %v312, 7
    %v314 = vsub.s32 1, %v313
    %v315 = vrot.slane %v306, %v314
    %v350 = vunpack.c.l.b16 %v274
    %v351 = vunpack.c.h.b16 %v274
    %v352 = vunpack.c.l.b16 %v275
    %v353 = vunpack.c.h.b16 %v275
    %v354 = vunpack.c.l.b16 %v276
    %v355 = vunpack.c.h.b16 %v276
    %v356 = vunpack.c.l.b16 %v277
    %v357 = vunpack.c.h.b16 %v277
    %v358 = vunpack.c.l.b16 %v278
    %v359 = vunpack.c.h.b16 %v278
    %v360 = vunpack.c.l.b16 %v279
    %v361 = vunpack.c.h.b16 %v279
    %v362 = vunpack.c.l.b16 %v280
    %v363 = vunpack.c.h.b16 %v280
    %v364 = vunpack.c.l.b16 %v281
    %v365 = vunpack.c.h.b16 %v281
    %v366 = vunpack.c.l.b16 %v282
    %v367 = vunpack.c.h.b16 %v282
    %v368 = vunpack.c.l.b16 %v283
    %v369 = vunpack.c.h.b16 %v283
    %v370 = vunpack.c.l.b16 %v284
    %v371 = vunpack.c.h.b16 %v284
    %v372 = vunpack.c.l.b16 %v285
    %v373 = vunpack.c.h.b16 %v285
    %v374 = vunpack.c.l.b16 %v286
    %v375 = vunpack.c.h.b16 %v286
    %v376 = vunpack.c.l.b16 %v287
    %v377 = vunpack.c.h.b16 %v287
    %v378 = vunpack.c.l.b16 %v288
    %v379 = vunpack.c.h.b16 %v288
    %v380 = vunpack.c.l.b16 %v289
    %v381 = vunpack.c.h.b16 %v289
    %v382 = vunpack.c.l.b16 %v290
    %v383 = vunpack.c.h.b16 %v290
    %v384 = vunpack.c.l.b16 %v291
    %v385 = vunpack.c.h.b16 %v291
    %v386 = vunpack.c.l.b16 %v292
    %v387 = vunpack.c.h.b16 %v292
    %v388 = vunpack.c.l.b16 %v293
    %v389 = vunpack.c.h.b16 %v293
    %v390 = vunpack.c.l.b16 %v294
    %v391 = vunpack.c.h.b16 %v294
    %v392 = vunpack.c.l.b16 %v295
    %v393 = vunpack.c.h.b16 %v295
    %v394 = vunpack.c.l.b16 %v296
    %v395 = vunpack.c.h.b16 %v296
    %v396 = vunpack.c.l.b16 %v297
    %v397 = vunpack.c.h.b16 %v297
    %v398 = vunpack.c.l.b16 %v298
    %v399 = vunpack.c.h.b16 %v298
    %v400 = vunpack.c.l.b16 %v299
    %v401 = vunpack.c.h.b16 %v299
    %v402 = vunpack.c.l.b16 %v300
    %v403 = vunpack.c.h.b16 %v300
    %v404 = vunpack.c.l.b16 %v301
    %v405 = vunpack.c.h.b16 %v301
    %v406 = vunpack.c.l.b16 %v302
    %v407 = vunpack.c.h.b16 %v302
    %v408 = vunpack.c.l.b16 %v303
    %v409 = vunpack.c.h.b16 %v303
    %v410 = vunpack.c.l.b16 %v304
    %v411 = vunpack.c.h.b16 %v304
    %v412 = vunpack.c.l.b16 %v305
    %v413 = vunpack.c.h.b16 %v305
    %v414 = vpack.c.b16 %v352, %v350
    %v415 = vpack.c.b16 %v353, %v351
    %v416 = vpack.c.b16 %v356, %v354
    %v417 = vpack.c.b16 %v357, %v355
    %v418 = vpack.c.b16 %v360, %v358
    %v419 = vpack.c.b16 %v361, %v359
    %v420 = vpack.c.b16 %v364, %v362
    %v421 = vpack.c.b16 %v365, %v363
    %v422 = vpack.c.b16 %v368, %v366
    %v423 = vpack.c.b16 %v369, %v367
    %v424 = vpack.c.b16 %v372, %v370
    %v425 = vpack.c.b16 %v373, %v371
    %v426 = vpack.c.b16 %v376, %v374
    %v427 = vpack.c.b16 %v377, %v375
    %v428 = vpack.c.b16 %v380, %v378
    %v429 = vpack.c.b16 %v381, %v379
    %v430 = vpack.c.b16 %v384, %v382
    %v431 = vpack.c.b16 %v385, %v383
    %v432 = vpack.c.b16 %v388, %v386
    %v433 = vpack.c.b16 %v389, %v387
    %v434 = vpack.c.b16 %v392, %v390
    %v435 = vpack.c.b16 %v393, %v391
    %v436 = vpack.c.b16 %v396, %v394
    %v437 = vpack.c.b16 %v397, %v395
    %v438 = vpack.c.b16 %v400, %v398
    %v439 = vpack.c.b16 %v401, %v399
    %v440 = vpack.c.b16 %v404, %v402
    %v441 = vpack.c.b16 %v405, %v403
    %v442 = vpack.c.b16 %v408, %v406
    %v443 = vpack.c.b16 %v409, %v407
    %v444 = vpack.c.b16 %v412, %v410
    %v445 = vpack.c.b16 %v413, %v411
    %478 = vmatprep.subr.bf16.mxu0 %v415
    %479 = vmatpush1.bf16.msra.mxu0 %v414
    %480 = vmatprep.subr.bf16.mxu0 %v417
    %481 = vmatpush1.bf16.msra.mxu0 %v416
    %482 = vmatprep.subr.bf16.mxu0 %v419
    %483 = vmatpush1.bf16.msra.mxu0 %v418
    %484 = vmatprep.subr.bf16.mxu0 %v421
    %485 = vmatpush1.bf16.msra.mxu0 %v420
    %486 = vmatprep.subr.bf16.mxu0 %v423
    %487 = vmatpush1.bf16.msra.mxu0 %v422
    %488 = vmatprep.subr.bf16.mxu0 %v425
    %489 = vmatpush1.bf16.msra.mxu0 %v424
    %490 = vmatprep.subr.bf16.mxu0 %v427
    %491 = vmatpush1.bf16.msra.mxu0 %v426
    %492 = vmatprep.subr.bf16.mxu0 %v429
    %493 = vmatpush1.bf16.msra.mxu0 %v428
    %494 = vmatprep.subr.bf16.mxu0 %v431
    %495 = vmatpush1.bf16.msra.mxu0 %v430
    %496 = vmatprep.subr.bf16.mxu0 %v433
    %497 = vmatpush1.bf16.msra.mxu0 %v432
    %498 = vmatprep.subr.bf16.mxu0 %v435
    %499 = vmatpush1.bf16.msra.mxu0 %v434
    %500 = vmatprep.subr.bf16.mxu0 %v437
    %501 = vmatpush1.bf16.msra.mxu0 %v436
    %502 = vmatprep.subr.bf16.mxu0 %v439
    %503 = vmatpush1.bf16.msra.mxu0 %v438
    %504 = vmatprep.subr.bf16.mxu0 %v441
    %505 = vmatpush1.bf16.msra.mxu0 %v440
    %506 = vmatprep.subr.bf16.mxu0 %v443
    %507 = vmatpush1.bf16.msra.mxu0 %v442
    %508 = vmatprep.subr.bf16.mxu0 %v445
    %509 = vmatpush1.bf16.msra.mxu0 %v444
    %510 = vmatprep.mubr.bf16.mxu0 %v211
    %511 = vmatmul.mubr.bf16.gmra.mrb[0].mxu0 %v210
    %v512 = vpop.f32.mrb[0].mxu0
    %v513 = vadd.f32 %v311, %v512
    %v514 = vpop.f32.mrb[0].mxu0
    %v515 = vadd.f32 %v315, %v514
    %v516 = vpop.f32.mrb[0].mxu0
    %v517 = vadd.f32 %v311, %v516
    %v518 = vpop.f32.mrb[0].mxu0
    %v519 = vadd.f32 %v315, %v518
    %520 = vmatprep.mubr.bf16.mxu0 %v213
    %521 = vmatmul.mubr.bf16.gmra.mrb[0].mxu0 %v212
    %v522 = vpop.f32.mrb[0].mxu0
    %v523 = vadd.f32 %v311, %v522
    %v524 = vpop.f32.mrb[0].mxu0
    %v525 = vadd.f32 %v315, %v524
    %v526 = vpop.f32.mrb[0].mxu0
    %v527 = vadd.f32 %v311, %v526
    %v528 = vpop.f32.mrb[0].mxu0
    %v529 = vadd.f32 %v315, %v528
    %530 = vmatprep.mubr.bf16.mxu0 %v215
    %531 = vmatmul.mubr.bf16.gmra.mrb[0].mxu0 %v214
    %v532 = vpop.f32.mrb[0].mxu0
    %v533 = vadd.f32 %v311, %v532
    %v534 = vpop.f32.mrb[0].mxu0
    %v535 = vadd.f32 %v315, %v534
    %v536 = vpop.f32.mrb[0].mxu0
    %v537 = vadd.f32 %v311, %v536
    %v538 = vpop.f32.mrb[0].mxu0
    %v539 = vadd.f32 %v315, %v538
    %540 = vmatprep.mubr.bf16.mxu0 %v217
    %541 = vmatmul.mubr.bf16.gmra.mrb[0].mxu0 %v216
    %v542 = vpop.f32.mrb[0].mxu0
    %v543 = vadd.f32 %v311, %v542
    %v544 = vpop.f32.mrb[0].mxu0
    %v545 = vadd.f32 %v315, %v544
    %v546 = vpop.f32.mrb[0].mxu0
    %v547 = vadd.f32 %v311, %v546
    %v548 = vpop.f32.mrb[0].mxu0
    %v549 = vadd.f32 %v315, %v548
    %550 = vmatprep.mubr.bf16.mxu0 %v219
    %551 = vmatmul.mubr.bf16.gmra.mrb[0].mxu0 %v218
    %v552 = vpop.f32.mrb[0].mxu0
    %v553 = vadd.f32 %v311, %v552
    %v554 = vpop.f32.mrb[0].mxu0
    %v555 = vadd.f32 %v315, %v554
    %v556 = vpop.f32.mrb[0].mxu0
    %v557 = vadd.f32 %v311, %v556
    %v558 = vpop.f32.mrb[0].mxu0
    %v559 = vadd.f32 %v315, %v558
    %560 = vmatprep.mubr.bf16.mxu0 %v221
    %561 = vmatmul.mubr.bf16.gmra.mrb[0].mxu0 %v220
    %v562 = vpop.f32.mrb[0].mxu0
    %v563 = vadd.f32 %v311, %v562
    %v564 = vpop.f32.mrb[0].mxu0
    %v565 = vadd.f32 %v315, %v564
    %v566 = vpop.f32.mrb[0].mxu0
    %v567 = vadd.f32 %v311, %v566
    %v568 = vpop.f32.mrb[0].mxu0
    %v569 = vadd.f32 %v315, %v568
    %570 = vmatprep.mubr.bf16.mxu0 %v223
    %571 = vmatmul.mubr.bf16.gmra.mrb[0].mxu0 %v222
    %v572 = vpop.f32.mrb[0].mxu0
    %v573 = vadd.f32 %v311, %v572
    %v574 = vpop.f32.mrb[0].mxu0
    %v575 = vadd.f32 %v315, %v574
    %v576 = vpop.f32.mrb[0].mxu0
    %v577 = vadd.f32 %v311, %v576
    %v578 = vpop.f32.mrb[0].mxu0
    %v579 = vadd.f32 %v315, %v578
    %580 = vmatprep.mubr.bf16.mxu0 %v225
    %581 = vmatmul.mubr.bf16.gmra.mrb[0].mxu0 %v224
    %v582 = vpop.f32.mrb[0].mxu0
    %v583 = vadd.f32 %v311, %v582
    %v584 = vpop.f32.mrb[0].mxu0
    %v585 = vadd.f32 %v315, %v584
    %v586 = vpop.f32.mrb[0].mxu0
    %v587 = vadd.f32 %v311, %v586
    %v588 = vpop.f32.mrb[0].mxu0
    %v589 = vadd.f32 %v315, %v588
    %590 = vmatprep.mubr.bf16.mxu0 %v227
    %591 = vmatmul.mubr.bf16.gmra.mrb[0].mxu0 %v226
    %v592 = vpop.f32.mrb[0].mxu0
    %v593 = vadd.f32 %v311, %v592
    %v594 = vpop.f32.mrb[0].mxu0
    %v595 = vadd.f32 %v315, %v594
    %v596 = vpop.f32.mrb[0].mxu0
    %v597 = vadd.f32 %v311, %v596
    %v598 = vpop.f32.mrb[0].mxu0
    %v599 = vadd.f32 %v315, %v598
    %600 = vmatprep.mubr.bf16.mxu0 %v229
    %601 = vmatmul.mubr.bf16.gmra.mrb[0].mxu0 %v228
    %v602 = vpop.f32.mrb[0].mxu0
    %v603 = vadd.f32 %v311, %v602
    %v604 = vpop.f32.mrb[0].mxu0
    %v605 = vadd.f32 %v315, %v604
    %v606 = vpop.f32.mrb[0].mxu0
    %v607 = vadd.f32 %v311, %v606
    %v608 = vpop.f32.mrb[0].mxu0
    %v609 = vadd.f32 %v315, %v608
    %610 = vmatprep.mubr.bf16.mxu0 %v231
    %611 = vmatmul.mubr.bf16.gmra.mrb[0].mxu0 %v230
    %v612 = vpop.f32.mrb[0].mxu0
    %v613 = vadd.f32 %v311, %v612
    %v614 = vpop.f32.mrb[0].mxu0
    %v615 = vadd.f32 %v315, %v614
    %v616 = vpop.f32.mrb[0].mxu0
    %v617 = vadd.f32 %v311, %v616
    %v618 = vpop.f32.mrb[0].mxu0
    %v619 = vadd.f32 %v315, %v618
    %620 = vmatprep.mubr.bf16.mxu0 %v233
    %621 = vmatmul.mubr.bf16.gmra.mrb[0].mxu0 %v232
    %v622 = vpop.f32.mrb[0].mxu0
    %v623 = vadd.f32 %v311, %v622
    %v624 = vpop.f32.mrb[0].mxu0
    %v625 = vadd.f32 %v315, %v624
    %v626 = vpop.f32.mrb[0].mxu0
    %v627 = vadd.f32 %v311, %v626
    %v628 = vpop.f32.mrb[0].mxu0
    %v629 = vadd.f32 %v315, %v628
    %630 = vmatprep.mubr.bf16.mxu0 %v235
    %631 = vmatmul.mubr.bf16.gmra.mrb[0].mxu0 %v234
    %v632 = vpop.f32.mrb[0].mxu0
    %v633 = vadd.f32 %v311, %v632
    %v634 = vpop.f32.mrb[0].mxu0
    %v635 = vadd.f32 %v315, %v634
    %v636 = vpop.f32.mrb[0].mxu0
    %v637 = vadd.f32 %v311, %v636
    %v638 = vpop.f32.mrb[0].mxu0
    %v639 = vadd.f32 %v315, %v638
    %640 = vmatprep.mubr.bf16.mxu0 %v237
    %641 = vmatmul.mubr.bf16.gmra.mrb[0].mxu0 %v236
    %v642 = vpop.f32.mrb[0].mxu0
    %v643 = vadd.f32 %v311, %v642
    %v644 = vpop.f32.mrb[0].mxu0
    %v645 = vadd.f32 %v315, %v644
    %v646 = vpop.f32.mrb[0].mxu0
    %v647 = vadd.f32 %v311, %v646
    %v648 = vpop.f32.mrb[0].mxu0
    %v649 = vadd.f32 %v315, %v648
    %650 = vmatprep.mubr.bf16.mxu0 %v239
    %651 = vmatmul.mubr.bf16.gmra.mrb[0].mxu0 %v238
    %v652 = vpop.f32.mrb[0].mxu0
    %v653 = vadd.f32 %v311, %v652
    %v654 = vpop.f32.mrb[0].mxu0
    %v655 = vadd.f32 %v315, %v654
    %v656 = vpop.f32.mrb[0].mxu0
    %v657 = vadd.f32 %v311, %v656
    %v658 = vpop.f32.mrb[0].mxu0
    %v659 = vadd.f32 %v315, %v658
    %660 = vmatprep.mubr.bf16.mxu0 %v241
    %661 = vmatmul.mubr.bf16.gmra.mrb[0].mxu0 %v240
    %v662 = vpop.f32.mrb[0].mxu0
    %v663 = vadd.f32 %v311, %v662
    %v664 = vpop.f32.mrb[0].mxu0
    %v665 = vadd.f32 %v315, %v664
    %v666 = vpop.f32.mrb[0].mxu0
    %v667 = vadd.f32 %v311, %v666
    %v668 = vpop.f32.mrb[0].mxu0
    %v669 = vadd.f32 %v315, %v668
    %670 = vmatprep.mubr.bf16.mxu0 %v243
    %671 = vmatmul.mubr.bf16.gmra.mrb[0].mxu0 %v242
    %v672 = vpop.f32.mrb[0].mxu0
    %v673 = vadd.f32 %v311, %v672
    %v674 = vpop.f32.mrb[0].mxu0
    %v675 = vadd.f32 %v315, %v674
    %v676 = vpop.f32.mrb[0].mxu0
    %v677 = vadd.f32 %v311, %v676
    %v678 = vpop.f32.mrb[0].mxu0
    %v679 = vadd.f32 %v315, %v678
    %680 = vmatprep.mubr.bf16.mxu0 %v245
    %681 = vmatmul.mubr.bf16.gmra.mrb[0].mxu0 %v244
    %v682 = vpop.f32.mrb[0].mxu0
    %v683 = vadd.f32 %v311, %v682
    %v684 = vpop.f32.mrb[0].mxu0
    %v685 = vadd.f32 %v315, %v684
    %v686 = vpop.f32.mrb[0].mxu0
    %v687 = vadd.f32 %v311, %v686
    %v688 = vpop.f32.mrb[0].mxu0
    %v689 = vadd.f32 %v315, %v688
    %690 = vmatprep.mubr.bf16.mxu0 %v247
    %691 = vmatmul.mubr.bf16.gmra.mrb[0].mxu0 %v246
    %v692 = vpop.f32.mrb[0].mxu0
    %v693 = vadd.f32 %v311, %v692
    %v694 = vpop.f32.mrb[0].mxu0
    %v695 = vadd.f32 %v315, %v694
    %v696 = vpop.f32.mrb[0].mxu0
    %v697 = vadd.f32 %v311, %v696
    %v698 = vpop.f32.mrb[0].mxu0
    %v699 = vadd.f32 %v315, %v698
    %700 = vmatprep.mubr.bf16.mxu0 %v249
    %701 = vmatmul.mubr.bf16.gmra.mrb[0].mxu0 %v248
    %v702 = vpop.f32.mrb[0].mxu0
    %v703 = vadd.f32 %v311, %v702
    %v704 = vpop.f32.mrb[0].mxu0
    %v705 = vadd.f32 %v315, %v704
    %v706 = vpop.f32.mrb[0].mxu0
    %v707 = vadd.f32 %v311, %v706
    %v708 = vpop.f32.mrb[0].mxu0
    %v709 = vadd.f32 %v315, %v708
    %710 = vmatprep.mubr.bf16.mxu0 %v251
    %711 = vmatmul.mubr.bf16.gmra.mrb[0].mxu0 %v250
    %v712 = vpop.f32.mrb[0].mxu0
    %v713 = vadd.f32 %v311, %v712
    %v714 = vpop.f32.mrb[0].mxu0
    %v715 = vadd.f32 %v315, %v714
    %v716 = vpop.f32.mrb[0].mxu0
    %v717 = vadd.f32 %v311, %v716
    %v718 = vpop.f32.mrb[0].mxu0
    %v719 = vadd.f32 %v315, %v718
    %720 = vmatprep.mubr.bf16.mxu0 %v253
    %721 = vmatmul.mubr.bf16.gmra.mrb[0].mxu0 %v252
    %v722 = vpop.f32.mrb[0].mxu0
    %v723 = vadd.f32 %v311, %v722
    %v724 = vpop.f32.mrb[0].mxu0
    %v725 = vadd.f32 %v315, %v724
    %v726 = vpop.f32.mrb[0].mxu0
    %v727 = vadd.f32 %v311, %v726
    %v728 = vpop.f32.mrb[0].mxu0
    %v729 = vadd.f32 %v315, %v728
    %730 = vmatprep.mubr.bf16.mxu0 %v255
    %731 = vmatmul.mubr.bf16.gmra.mrb[0].mxu0 %v254
    %v732 = vpop.f32.mrb[0].mxu0
    %v733 = vadd.f32 %v311, %v732
    %v734 = vpop.f32.mrb[0].mxu0
    %v735 = vadd.f32 %v315, %v734
    %v736 = vpop.f32.mrb[0].mxu0
    %v737 = vadd.f32 %v311, %v736
    %v738 = vpop.f32.mrb[0].mxu0
    %v739 = vadd.f32 %v315, %v738
    %740 = vmatprep.mubr.bf16.mxu0 %v257
    %741 = vmatmul.mubr.bf16.gmra.mrb[0].mxu0 %v256
    %v742 = vpop.f32.mrb[0].mxu0
    %v743 = vadd.f32 %v311, %v742
    %v744 = vpop.f32.mrb[0].mxu0
    %v745 = vadd.f32 %v315, %v744
    %v746 = vpop.f32.mrb[0].mxu0
    %v747 = vadd.f32 %v311, %v746
    %v748 = vpop.f32.mrb[0].mxu0
    %v749 = vadd.f32 %v315, %v748
    %750 = vmatprep.mubr.bf16.mxu0 %v259
    %751 = vmatmul.mubr.bf16.gmra.mrb[0].mxu0 %v258
    %v752 = vpop.f32.mrb[0].mxu0
    %v753 = vadd.f32 %v311, %v752
    %v754 = vpop.f32.mrb[0].mxu0
    %v755 = vadd.f32 %v315, %v754
    %v756 = vpop.f32.mrb[0].mxu0
    %v757 = vadd.f32 %v311, %v756
    %v758 = vpop.f32.mrb[0].mxu0
    %v759 = vadd.f32 %v315, %v758
    %760 = vmatprep.mubr.bf16.mxu0 %v261
    %761 = vmatmul.mubr.bf16.gmra.mrb[0].mxu0 %v260
    %v762 = vpop.f32.mrb[0].mxu0
    %v763 = vadd.f32 %v311, %v762
    %v764 = vpop.f32.mrb[0].mxu0
    %v765 = vadd.f32 %v315, %v764
    %v766 = vpop.f32.mrb[0].mxu0
    %v767 = vadd.f32 %v311, %v766
    %v768 = vpop.f32.mrb[0].mxu0
    %v769 = vadd.f32 %v315, %v768
    %770 = vmatprep.mubr.bf16.mxu0 %v263
    %771 = vmatmul.mubr.bf16.gmra.mrb[0].mxu0 %v262
    %v772 = vpop.f32.mrb[0].mxu0
    %v773 = vadd.f32 %v311, %v772
    %v774 = vpop.f32.mrb[0].mxu0
    %v775 = vadd.f32 %v315, %v774
    %v776 = vpop.f32.mrb[0].mxu0
    %v777 = vadd.f32 %v311, %v776
    %v778 = vpop.f32.mrb[0].mxu0
    %v779 = vadd.f32 %v315, %v778
    %780 = vmatprep.mubr.bf16.mxu0 %v265
    %781 = vmatmul.mubr.bf16.gmra.mrb[0].mxu0 %v264
    %v782 = vpop.f32.mrb[0].mxu0
    %v783 = vadd.f32 %v311, %v782
    %v784 = vpop.f32.mrb[0].mxu0
    %v785 = vadd.f32 %v315, %v784
    %v786 = vpop.f32.mrb[0].mxu0
    %v787 = vadd.f32 %v311, %v786
    %v788 = vpop.f32.mrb[0].mxu0
    %v789 = vadd.f32 %v315, %v788
    %790 = vmatprep.mubr.bf16.mxu0 %v267
    %791 = vmatmul.mubr.bf16.gmra.mrb[0].mxu0 %v266
    %v792 = vpop.f32.mrb[0].mxu0
    %v793 = vadd.f32 %v311, %v792
    %v794 = vpop.f32.mrb[0].mxu0
    %v795 = vadd.f32 %v315, %v794
    %v796 = vpop.f32.mrb[0].mxu0
    %v797 = vadd.f32 %v311, %v796
    %v798 = vpop.f32.mrb[0].mxu0
    %v799 = vadd.f32 %v315, %v798
    %800 = vmatprep.mubr.bf16.mxu0 %v269
    %801 = vmatmul.mubr.bf16.gmra.mrb[0].mxu0 %v268
    %v802 = vpop.f32.mrb[0].mxu0
    %v803 = vadd.f32 %v311, %v802
    %v804 = vpop.f32.mrb[0].mxu0
    %v805 = vadd.f32 %v315, %v804
    %v806 = vpop.f32.mrb[0].mxu0
    %v807 = vadd.f32 %v311, %v806
    %v808 = vpop.f32.mrb[0].mxu0
    %v809 = vadd.f32 %v315, %v808
    %810 = vmatprep.mubr.bf16.mxu0 %v271
    %811 = vmatmul.mubr.bf16.gmra.mrb[0].mxu0 %v270
    %v812 = vpop.f32.mrb[0].mxu0
    %v813 = vadd.f32 %v311, %v812
    %v814 = vpop.f32.mrb[0].mxu0
    %v815 = vadd.f32 %v315, %v814
    %v816 = vpop.f32.mrb[0].mxu0
    %v817 = vadd.f32 %v311, %v816
    %v818 = vpop.f32.mrb[0].mxu0
    %v819 = vadd.f32 %v315, %v818
    %820 = vmatprep.mubr.bf16.mxu0 %v273
    %821 = vmatmul.mubr.bf16.gmra.mrb[0].mxu0 %v272
    %v822 = vpop.f32.mrb[0].mxu0
    %v823 = vadd.f32 %v311, %v822
    %v824 = vpop.f32.mrb[0].mxu0
    %v825 = vadd.f32 %v315, %v824
    %v826 = vpop.f32.mrb[0].mxu0
    %v827 = vadd.f32 %v311, %v826
    %v828 = vpop.f32.mrb[0].mxu0
    %v829 = vadd.f32 %v315, %v828
    %830 = vdwg.mxu0
    %v831 = vtanh.pop %v513
    %v832 = vtanh.pop %v515
    %v833 = vtanh.pop %v517
    %v834 = vtanh.pop %v519
    %v835 = vtanh.pop %v523
    %v836 = vtanh.pop %v525
    %v837 = vtanh.pop %v527
    %v838 = vtanh.pop %v529
    %v839 = vtanh.pop %v533
    %v840 = vtanh.pop %v535
    %v841 = vtanh.pop %v537
    %v842 = vtanh.pop %v539
    %v843 = vtanh.pop %v543
    %v844 = vtanh.pop %v545
    %v845 = vtanh.pop %v547
    %v846 = vtanh.pop %v549
    %v847 = vtanh.pop %v553
    %v848 = vtanh.pop %v555
    %v849 = vtanh.pop %v557
    %v850 = vtanh.pop %v559
    %v851 = vtanh.pop %v563
    %v852 = vtanh.pop %v565
    %v853 = vtanh.pop %v567
    %v854 = vtanh.pop %v569
    %v855 = vtanh.pop %v573
    %v856 = vtanh.pop %v575
    %v857 = vtanh.pop %v577
    %v858 = vtanh.pop %v579
    %v859 = vtanh.pop %v583
    %v860 = vtanh.pop %v585
    %v861 = vtanh.pop %v587
    %v862 = vtanh.pop %v589
    %v863 = vtanh.pop %v593
    %v864 = vtanh.pop %v595
    %v865 = vtanh.pop %v597
    %v866 = vtanh.pop %v599
    %v867 = vtanh.pop %v603
    %v868 = vtanh.pop %v605
    %v869 = vtanh.pop %v607
    %v870 = vtanh.pop %v609
    %v871 = vtanh.pop %v613
    %v872 = vtanh.pop %v615
    %v873 = vtanh.pop %v617
    %v874 = vtanh.pop %v619
    %v875 = vtanh.pop %v623
    %v876 = vtanh.pop %v625
    %v877 = vtanh.pop %v627
    %v878 = vtanh.pop %v629
    %v879 = vtanh.pop %v633
    %v880 = vtanh.pop %v635
    %v881 = vtanh.pop %v637
    %v882 = vtanh.pop %v639
    %v883 = vtanh.pop %v643
    %v884 = vtanh.pop %v645
    %v885 = vtanh.pop %v647
    %v886 = vtanh.pop %v649
    %v887 = vtanh.pop %v653
    %v888 = vtanh.pop %v655
    %v889 = vtanh.pop %v657
    %v890 = vtanh.pop %v659
    %v891 = vtanh.pop %v663
    %v892 = vtanh.pop %v665
    %v893 = vtanh.pop %v667
    %v894 = vtanh.pop %v669
    %v895 = vtanh.pop %v673
    %v896 = vtanh.pop %v675
    %v897 = vtanh.pop %v677
    %v898 = vtanh.pop %v679
    %v899 = vtanh.pop %v683
    %v900 = vtanh.pop %v685
    %v901 = vtanh.pop %v687
    %v902 = vtanh.pop %v689
    %v903 = vtanh.pop %v693
    %v904 = vtanh.pop %v695
    %v905 = vtanh.pop %v697
    %v906 = vtanh.pop %v699
    %v907 = vtanh.pop %v703
    %v908 = vtanh.pop %v705
    %v909 = vtanh.pop %v707
    %v910 = vtanh.pop %v709
    %v911 = vtanh.pop %v713
    %v912 = vtanh.pop %v715
    %v913 = vtanh.pop %v717
    %v914 = vtanh.pop %v719
    %v915 = vtanh.pop %v723
    %v916 = vtanh.pop %v725
    %v917 = vtanh.pop %v727
    %v918 = vtanh.pop %v729
    %v919 = vtanh.pop %v733
    %v920 = vtanh.pop %v735
    %v921 = vtanh.pop %v737
    %v922 = vtanh.pop %v739
    %v923 = vtanh.pop %v743
    %v924 = vtanh.pop %v745
    %v925 = vtanh.pop %v747
    %v926 = vtanh.pop %v749
    %v927 = vtanh.pop %v753
    %v928 = vtanh.pop %v755
    %v929 = vtanh.pop %v757
    %v930 = vtanh.pop %v759
    %v931 = vtanh.pop %v763
    %v932 = vtanh.pop %v765
    %v933 = vtanh.pop %v767
    %v934 = vtanh.pop %v769
    %v935 = vtanh.pop %v773
    %v936 = vtanh.pop %v775
    %v937 = vtanh.pop %v777
    %v938 = vtanh.pop %v779
    %v939 = vtanh.pop %v783
    %v940 = vtanh.pop %v785
    %v941 = vtanh.pop %v787
    %v942 = vtanh.pop %v789
    %v943 = vtanh.pop %v793
    %v944 = vtanh.pop %v795
    %v945 = vtanh.pop %v797
    %v946 = vtanh.pop %v799
    %v947 = vtanh.pop %v803
    %v948 = vtanh.pop %v805
    %v949 = vtanh.pop %v807
    %v950 = vtanh.pop %v809
    %v951 = vtanh.pop %v813
    %v952 = vtanh.pop %v815
    %v953 = vtanh.pop %v817
    %v954 = vtanh.pop %v819
    %v955 = vtanh.pop %v823
    %v956 = vtanh.pop %v825
    %v957 = vtanh.pop %v827
    %v958 = vtanh.pop %v829
    %v959 = vpack.c.bf16 %v833, %v831
    %v960 = vpack.c.bf16 %v834, %v832
    %v961 = vpack.c.bf16 %v837, %v835
    %v962 = vpack.c.bf16 %v838, %v836
    %v963 = vpack.c.bf16 %v841, %v839
    %v964 = vpack.c.bf16 %v842, %v840
    %v965 = vpack.c.bf16 %v845, %v843
    %v966 = vpack.c.bf16 %v846, %v844
    %v967 = vpack.c.bf16 %v849, %v847
    %v968 = vpack.c.bf16 %v850, %v848
    %v969 = vpack.c.bf16 %v853, %v851
    %v970 = vpack.c.bf16 %v854, %v852
    %v971 = vpack.c.bf16 %v857, %v855
    %v972 = vpack.c.bf16 %v858, %v856
    %v973 = vpack.c.bf16 %v861, %v859
    %v974 = vpack.c.bf16 %v862, %v860
    %v975 = vpack.c.bf16 %v865, %v863
    %v976 = vpack.c.bf16 %v866, %v864
    %v977 = vpack.c.bf16 %v869, %v867
    %v978 = vpack.c.bf16 %v870, %v868
    %v979 = vpack.c.bf16 %v873, %v871
    %v980 = vpack.c.bf16 %v874, %v872
    %v981 = vpack.c.bf16 %v877, %v875
    %v982 = vpack.c.bf16 %v878, %v876
    %v983 = vpack.c.bf16 %v881, %v879
    %v984 = vpack.c.bf16 %v882, %v880
    %v985 = vpack.c.bf16 %v885, %v883
    %v986 = vpack.c.bf16 %v886, %v884
    %v987 = vpack.c.bf16 %v889, %v887
    %v988 = vpack.c.bf16 %v890, %v888
    %v989 = vpack.c.bf16 %v893, %v891
    %v990 = vpack.c.bf16 %v894, %v892
    %v991 = vpack.c.bf16 %v897, %v895
    %v992 = vpack.c.bf16 %v898, %v896
    %v993 = vpack.c.bf16 %v901, %v899
    %v994 = vpack.c.bf16 %v902, %v900
    %v995 = vpack.c.bf16 %v905, %v903
    %v996 = vpack.c.bf16 %v906, %v904
    %v997 = vpack.c.bf16 %v909, %v907
    %v998 = vpack.c.bf16 %v910, %v908
    %v999 = vpack.c.bf16 %v913, %v911
    %v1000 = vpack.c.bf16 %v914, %v912
    %v1001 = vpack.c.bf16 %v917, %v915
    %v1002 = vpack.c.bf16 %v918, %v916
    %v1003 = vpack.c.bf16 %v921, %v919
    %v1004 = vpack.c.bf16 %v922, %v920
    %v1005 = vpack.c.bf16 %v925, %v923
    %v1006 = vpack.c.bf16 %v926, %v924
    %v1007 = vpack.c.bf16 %v929, %v927
    %v1008 = vpack.c.bf16 %v930, %v928
    %v1009 = vpack.c.bf16 %v933, %v931
    %v1010 = vpack.c.bf16 %v934, %v932
    %v1011 = vpack.c.bf16 %v937, %v935
    %v1012 = vpack.c.bf16 %v938, %v936
    %v1013 = vpack.c.bf16 %v941, %v939
    %v1014 = vpack.c.bf16 %v942, %v940
    %v1015 = vpack.c.bf16 %v945, %v943
    %v1016 = vpack.c.bf16 %v946, %v944
    %v1017 = vpack.c.bf16 %v949, %v947
    %v1018 = vpack.c.bf16 %v950, %v948
    %v1019 = vpack.c.bf16 %v953, %v951
    %v1020 = vpack.c.bf16 %v954, %v952
    %v1021 = vpack.c.bf16 %v957, %v955
    %v1022 = vpack.c.bf16 %v958, %v956
    %v1023 = vld [vmem:[#allocation7] sm:$0xff]
    %v1024 = vld [vmem:[#allocation7 + $0x8] sm:$0xff]
    %v1025 = vld [vmem:[#allocation7 + $0x10] sm:$0xff]
    %v1026 = vld [vmem:[#allocation7 + $0x18] sm:$0xff]
    %v1027 = vld [vmem:[#allocation7 + $0x20] sm:$0xff]
    %v1028 = vld [vmem:[#allocation7 + $0x28] sm:$0xff]
    %v1029 = vld [vmem:[#allocation7 + $0x30] sm:$0xff]
    %v1030 = vld [vmem:[#allocation7 + $0x38] sm:$0xff]
    %v1031 = vld [vmem:[#allocation7 + $0x40] sm:$0xff]
    %v1032 = vld [vmem:[#allocation7 + $0x48] sm:$0xff]
    %v1033 = vld [vmem:[#allocation7 + $0x50] sm:$0xff]
    %v1034 = vld [vmem:[#allocation7 + $0x58] sm:$0xff]
    %v1035 = vld [vmem:[#allocation7 + $0x60] sm:$0xff]
    %v1036 = vld [vmem:[#allocation7 + $0x68] sm:$0xff]
    %v1037 = vld [vmem:[#allocation7 + $0x70] sm:$0xff]
    %v1038 = vld [vmem:[#allocation7 + $0x78] sm:$0xff]
    %v1039 = vld [vmem:[#allocation7 + $0x80] sm:$0xff]
    %v1040 = vld [vmem:[#allocation7 + $0x88] sm:$0xff]
    %v1041 = vld [vmem:[#allocation7 + $0x90] sm:$0xff]
    %v1042 = vld [vmem:[#allocation7 + $0x98] sm:$0xff]
    %v1043 = vld [vmem:[#allocation7 + $0xa0] sm:$0xff]
    %v1044 = vld [vmem:[#allocation7 + $0xa8] sm:$0xff]
    %v1045 = vld [vmem:[#allocation7 + $0xb0] sm:$0xff]
    %v1046 = vld [vmem:[#allocation7 + $0xb8] sm:$0xff]
    %v1047 = vld [vmem:[#allocation7 + $0xc0] sm:$0xff]
    %v1048 = vld [vmem:[#allocation7 + $0xc8] sm:$0xff]
    %v1049 = vld [vmem:[#allocation7 + $0xd0] sm:$0xff]
    %v1050 = vld [vmem:[#allocation7 + $0xd8] sm:$0xff]
    %v1051 = vld [vmem:[#allocation7 + $0xe0] sm:$0xff]
    %v1052 = vld [vmem:[#allocation7 + $0xe8] sm:$0xff]
    %v1053 = vld [vmem:[#allocation7 + $0xf0] sm:$0xff]
    %v1054 = vld [vmem:[#allocation7 + $0xf8] sm:$0xff]
    %v1055 = vld [vmem:[%s4] sm:$0x3]
    %v1057 = vlaneseq
    %v1058 = vshrl.u32 %v1057, 7
    %v1059 = vsub.s32 0, %v1058
    %v1060 = vrot.slane %v1055, %v1059
    %v1061 = vlaneseq
    %v1062 = vshrl.u32 %v1061, 7
    %v1063 = vsub.s32 1, %v1062
    %v1064 = vrot.slane %v1055, %v1063
    %v1099 = vunpack.c.l.b16 %v1023
    %v1100 = vunpack.c.h.b16 %v1023
    %v1101 = vunpack.c.l.b16 %v1024
    %v1102 = vunpack.c.h.b16 %v1024
    %v1103 = vunpack.c.l.b16 %v1025
    %v1104 = vunpack.c.h.b16 %v1025
    %v1105 = vunpack.c.l.b16 %v1026
    %v1106 = vunpack.c.h.b16 %v1026
    %v1107 = vunpack.c.l.b16 %v1027
    %v1108 = vunpack.c.h.b16 %v1027
    %v1109 = vunpack.c.l.b16 %v1028
    %v1110 = vunpack.c.h.b16 %v1028
    %v1111 = vunpack.c.l.b16 %v1029
    %v1112 = vunpack.c.h.b16 %v1029
    %v1113 = vunpack.c.l.b16 %v1030
    %v1114 = vunpack.c.h.b16 %v1030
    %v1115 = vunpack.c.l.b16 %v1031
    %v1116 = vunpack.c.h.b16 %v1031
    %v1117 = vunpack.c.l.b16 %v1032
    %v1118 = vunpack.c.h.b16 %v1032
    %v1119 = vunpack.c.l.b16 %v1033
    %v1120 = vunpack.c.h.b16 %v1033
    %v1121 = vunpack.c.l.b16 %v1034
    %v1122 = vunpack.c.h.b16 %v1034
    %v1123 = vunpack.c.l.b16 %v1035
    %v1124 = vunpack.c.h.b16 %v1035
    %v1125 = vunpack.c.l.b16 %v1036
    %v1126 = vunpack.c.h.b16 %v1036
    %v1127 = vunpack.c.l.b16 %v1037
    %v1128 = vunpack.c.h.b16 %v1037
    %v1129 = vunpack.c.l.b16 %v1038
    %v1130 = vunpack.c.h.b16 %v1038
    %v1131 = vunpack.c.l.b16 %v1039
    %v1132 = vunpack.c.h.b16 %v1039
    %v1133 = vunpack.c.l.b16 %v1040
    %v1134 = vunpack.c.h.b16 %v1040
    %v1135 = vunpack.c.l.b16 %v1041
    %v1136 = vunpack.c.h.b16 %v1041
    %v1137 = vunpack.c.l.b16 %v1042
    %v1138 = vunpack.c.h.b16 %v1042
    %v1139 = vunpack.c.l.b16 %v1043
    %v1140 = vunpack.c.h.b16 %v1043
    %v1141 = vunpack.c.l.b16 %v1044
    %v1142 = vunpack.c.h.b16 %v1044
    %v1143 = vunpack.c.l.b16 %v1045
    %v1144 = vunpack.c.h.b16 %v1045
    %v1145 = vunpack.c.l.b16 %v1046
    %v1146 = vunpack.c.h.b16 %v1046
    %v1147 = vunpack.c.l.b16 %v1047
    %v1148 = vunpack.c.h.b16 %v1047
    %v1149 = vunpack.c.l.b16 %v1048
    %v1150 = vunpack.c.h.b16 %v1048
    %v1151 = vunpack.c.l.b16 %v1049
    %v1152 = vunpack.c.h.b16 %v1049
    %v1153 = vunpack.c.l.b16 %v1050
    %v1154 = vunpack.c.h.b16 %v1050
    %v1155 = vunpack.c.l.b16 %v1051
    %v1156 = vunpack.c.h.b16 %v1051
    %v1157 = vunpack.c.l.b16 %v1052
    %v1158 = vunpack.c.h.b16 %v1052
    %v1159 = vunpack.c.l.b16 %v1053
    %v1160 = vunpack.c.h.b16 %v1053
    %v1161 = vunpack.c.l.b16 %v1054
    %v1162 = vunpack.c.h.b16 %v1054
    %v1163 = vpack.c.b16 %v1101, %v1099
    %v1164 = vpack.c.b16 %v1102, %v1100
    %v1165 = vpack.c.b16 %v1105, %v1103
    %v1166 = vpack.c.b16 %v1106, %v1104
    %v1167 = vpack.c.b16 %v1109, %v1107
    %v1168 = vpack.c.b16 %v1110, %v1108
    %v1169 = vpack.c.b16 %v1113, %v1111
    %v1170 = vpack.c.b16 %v1114, %v1112
    %v1171 = vpack.c.b16 %v1117, %v1115
    %v1172 = vpack.c.b16 %v1118, %v1116
    %v1173 = vpack.c.b16 %v1121, %v1119
    %v1174 = vpack.c.b16 %v1122, %v1120
    %v1175 = vpack.c.b16 %v1125, %v1123
    %v1176 = vpack.c.b16 %v1126, %v1124
    %v1177 = vpack.c.b16 %v1129, %v1127
    %v1178 = vpack.c.b16 %v1130, %v1128
    %v1179 = vpack.c.b16 %v1133, %v1131
    %v1180 = vpack.c.b16 %v1134, %v1132
    %v1181 = vpack.c.b16 %v1137, %v1135
    %v1182 = vpack.c.b16 %v1138, %v1136
    %v1183 = vpack.c.b16 %v1141, %v1139
    %v1184 = vpack.c.b16 %v1142, %v1140
    %v1185 = vpack.c.b16 %v1145, %v1143
    %v1186 = vpack.c.b16 %v1146, %v1144
    %v1187 = vpack.c.b16 %v1149, %v1147
    %v1188 = vpack.c.b16 %v1150, %v1148
    %v1189 = vpack.c.b16 %v1153, %v1151
    %v1190 = vpack.c.b16 %v1154, %v1152
    %v1191 = vpack.c.b16 %v1157, %v1155
    %v1192 = vpack.c.b16 %v1158, %v1156
    %v1193 = vpack.c.b16 %v1161, %v1159
    %v1194 = vpack.c.b16 %v1162, %v1160
    %1227 = vmatprep.subr.bf16.mxu0 %v1164
    %1228 = vmatpush1.bf16.msra.mxu0 %v1163
    %1229 = vmatprep.subr.bf16.mxu0 %v1166
    %1230 = vmatpush1.bf16.msra.mxu0 %v1165
    %1231 = vmatprep.subr.bf16.mxu0 %v1168
    %1232 = vmatpush1.bf16.msra.mxu0 %v1167
    %1233 = vmatprep.subr.bf16.mxu0 %v1170
    %1234 = vmatpush1.bf16.msra.mxu0 %v1169
    %1235 = vmatprep.subr.bf16.mxu0 %v1172
    %1236 = vmatpush1.bf16.msra.mxu0 %v1171
    %1237 = vmatprep.subr.bf16.mxu0 %v1174
    %1238 = vmatpush1.bf16.msra.mxu0 %v1173
    %1239 = vmatprep.subr.bf16.mxu0 %v1176
    %1240 = vmatpush1.bf16.msra.mxu0 %v1175
    %1241 = vmatprep.subr.bf16.mxu0 %v1178
    %1242 = vmatpush1.bf16.msra.mxu0 %v1177
    %1243 = vmatprep.subr.bf16.mxu0 %v1180
    %1244 = vmatpush1.bf16.msra.mxu0 %v1179
    %1245 = vmatprep.subr.bf16.mxu0 %v1182
    %1246 = vmatpush1.bf16.msra.mxu0 %v1181
    %1247 = vmatprep.subr.bf16.mxu0 %v1184
    %1248 = vmatpush1.bf16.msra.mxu0 %v1183
    %1249 = vmatprep.subr.bf16.mxu0 %v1186
    %1250 = vmatpush1.bf16.msra.mxu0 %v1185
    %1251 = vmatprep.subr.bf16.mxu0 %v1188
    %1252 = vmatpush1.bf16.msra.mxu0 %v1187
    %1253 = vmatprep.subr.bf16.mxu0 %v1190
    %1254 = vmatpush1.bf16.msra.mxu0 %v1189
    %1255 = vmatprep.subr.bf16.mxu0 %v1192
    %1256 = vmatpush1.bf16.msra.mxu0 %v1191
    %1257 = vmatprep.subr.bf16.mxu0 %v1194
    %1258 = vmatpush1.bf16.msra.mxu0 %v1193
    %1259 = vmatprep.mubr.bf16.mxu0 %v960
    %1260 = vmatmul.mubr.bf16.gmra.mrb[0].mxu0 %v959
    %v1261 = vpop.f32.mrb[0].mxu0
    %v1262 = vadd.f32 %v1060, %v1261
    %v1263 = vpop.f32.mrb[0].mxu0
    %v1264 = vadd.f32 %v1064, %v1263
    %v1265 = vpop.f32.mrb[0].mxu0
    %v1266 = vadd.f32 %v1060, %v1265
    %v1267 = vpop.f32.mrb[0].mxu0
    %v1268 = vadd.f32 %v1064, %v1267
    %1269 = vmatprep.mubr.bf16.mxu0 %v962
    %1270 = vmatmul.mubr.bf16.gmra.mrb[0].mxu0 %v961
    %v1271 = vpop.f32.mrb[0].mxu0
    %v1272 = vadd.f32 %v1060, %v1271
    %v1273 = vpop.f32.mrb[0].mxu0
    %v1274 = vadd.f32 %v1064, %v1273
    %v1275 = vpop.f32.mrb[0].mxu0
    %v1276 = vadd.f32 %v1060, %v1275
    %v1277 = vpop.f32.mrb[0].mxu0
    %v1278 = vadd.f32 %v1064, %v1277
    %1279 = vmatprep.mubr.bf16.mxu0 %v964
    %1280 = vmatmul.mubr.bf16.gmra.mrb[0].mxu0 %v963
    %v1281 = vpop.f32.mrb[0].mxu0
    %v1282 = vadd.f32 %v1060, %v1281
    %v1283 = vpop.f32.mrb[0].mxu0
    %v1284 = vadd.f32 %v1064, %v1283
    %v1285 = vpop.f32.mrb[0].mxu0
    %v1286 = vadd.f32 %v1060, %v1285
    %v1287 = vpop.f32.mrb[0].mxu0
    %v1288 = vadd.f32 %v1064, %v1287
    %1289 = vmatprep.mubr.bf16.mxu0 %v966
    %1290 = vmatmul.mubr.bf16.gmra.mrb[0].mxu0 %v965
    %v1291 = vpop.f32.mrb[0].mxu0
    %v1292 = vadd.f32 %v1060, %v1291
    %v1293 = vpop.f32.mrb[0].mxu0
    %v1294 = vadd.f32 %v1064, %v1293
    %v1295 = vpop.f32.mrb[0].mxu0
    %v1296 = vadd.f32 %v1060, %v1295
    %v1297 = vpop.f32.mrb[0].mxu0
    %v1298 = vadd.f32 %v1064, %v1297
    %1299 = vmatprep.mubr.bf16.mxu0 %v968
    %1300 = vmatmul.mubr.bf16.gmra.mrb[0].mxu0 %v967
    %v1301 = vpop.f32.mrb[0].mxu0
    %v1302 = vadd.f32 %v1060, %v1301
    %v1303 = vpop.f32.mrb[0].mxu0
    %v1304 = vadd.f32 %v1064, %v1303
    %v1305 = vpop.f32.mrb[0].mxu0
    %v1306 = vadd.f32 %v1060, %v1305
    %v1307 = vpop.f32.mrb[0].mxu0
    %v1308 = vadd.f32 %v1064, %v1307
    %1309 = vmatprep.mubr.bf16.mxu0 %v970
    %1310 = vmatmul.mubr.bf16.gmra.mrb[0].mxu0 %v969
    %v1311 = vpop.f32.mrb[0].mxu0
    %v1312 = vadd.f32 %v1060, %v1311
    %v1313 = vpop.f32.mrb[0].mxu0
    %v1314 = vadd.f32 %v1064, %v1313
    %v1315 = vpop.f32.mrb[0].mxu0
    %v1316 = vadd.f32 %v1060, %v1315
    %v1317 = vpop.f32.mrb[0].mxu0
    %v1318 = vadd.f32 %v1064, %v1317
    %1319 = vmatprep.mubr.bf16.mxu0 %v972
    %1320 = vmatmul.mubr.bf16.gmra.mrb[0].mxu0 %v971
    %v1321 = vpop.f32.mrb[0].mxu0
    %v1322 = vadd.f32 %v1060, %v1321
    %v1323 = vpop.f32.mrb[0].mxu0
    %v1324 = vadd.f32 %v1064, %v1323
    %v1325 = vpop.f32.mrb[0].mxu0
    %v1326 = vadd.f32 %v1060, %v1325
    %v1327 = vpop.f32.mrb[0].mxu0
    %v1328 = vadd.f32 %v1064, %v1327
    %1329 = vmatprep.mubr.bf16.mxu0 %v974
    %1330 = vmatmul.mubr.bf16.gmra.mrb[0].mxu0 %v973
    %v1331 = vpop.f32.mrb[0].mxu0
    %v1332 = vadd.f32 %v1060, %v1331
    %v1333 = vpop.f32.mrb[0].mxu0
    %v1334 = vadd.f32 %v1064, %v1333
    %v1335 = vpop.f32.mrb[0].mxu0
    %v1336 = vadd.f32 %v1060, %v1335
    %v1337 = vpop.f32.mrb[0].mxu0
    %v1338 = vadd.f32 %v1064, %v1337
    %1339 = vmatprep.mubr.bf16.mxu0 %v976
    %1340 = vmatmul.mubr.bf16.gmra.mrb[0].mxu0 %v975
    %v1341 = vpop.f32.mrb[0].mxu0
    %v1342 = vadd.f32 %v1060, %v1341
    %v1343 = vpop.f32.mrb[0].mxu0
    %v1344 = vadd.f32 %v1064, %v1343
    %v1345 = vpop.f32.mrb[0].mxu0
    %v1346 = vadd.f32 %v1060, %v1345
    %v1347 = vpop.f32.mrb[0].mxu0
    %v1348 = vadd.f32 %v1064, %v1347
    %1349 = vmatprep.mubr.bf16.mxu0 %v978
    %1350 = vmatmul.mubr.bf16.gmra.mrb[0].mxu0 %v977
    %v1351 = vpop.f32.mrb[0].mxu0
    %v1352 = vadd.f32 %v1060, %v1351
    %v1353 = vpop.f32.mrb[0].mxu0
    %v1354 = vadd.f32 %v1064, %v1353
    %v1355 = vpop.f32.mrb[0].mxu0
    %v1356 = vadd.f32 %v1060, %v1355
    %v1357 = vpop.f32.mrb[0].mxu0
    %v1358 = vadd.f32 %v1064, %v1357
    %1359 = vmatprep.mubr.bf16.mxu0 %v980
    %1360 = vmatmul.mubr.bf16.gmra.mrb[0].mxu0 %v979
    %v1361 = vpop.f32.mrb[0].mxu0
    %v1362 = vadd.f32 %v1060, %v1361
    %v1363 = vpop.f32.mrb[0].mxu0
    %v1364 = vadd.f32 %v1064, %v1363
    %v1365 = vpop.f32.mrb[0].mxu0
    %v1366 = vadd.f32 %v1060, %v1365
    %v1367 = vpop.f32.mrb[0].mxu0
    %v1368 = vadd.f32 %v1064, %v1367
    %1369 = vmatprep.mubr.bf16.mxu0 %v982
    %1370 = vmatmul.mubr.bf16.gmra.mrb[0].mxu0 %v981
    %v1371 = vpop.f32.mrb[0].mxu0
    %v1372 = vadd.f32 %v1060, %v1371
    %v1373 = vpop.f32.mrb[0].mxu0
    %v1374 = vadd.f32 %v1064, %v1373
    %v1375 = vpop.f32.mrb[0].mxu0
    %v1376 = vadd.f32 %v1060, %v1375
    %v1377 = vpop.f32.mrb[0].mxu0
    %v1378 = vadd.f32 %v1064, %v1377
    %1379 = vmatprep.mubr.bf16.mxu0 %v984
    %1380 = vmatmul.mubr.bf16.gmra.mrb[0].mxu0 %v983
    %v1381 = vpop.f32.mrb[0].mxu0
    %v1382 = vadd.f32 %v1060, %v1381
    %v1383 = vpop.f32.mrb[0].mxu0
    %v1384 = vadd.f32 %v1064, %v1383
    %v1385 = vpop.f32.mrb[0].mxu0
    %v1386 = vadd.f32 %v1060, %v1385
    %v1387 = vpop.f32.mrb[0].mxu0
    %v1388 = vadd.f32 %v1064, %v1387
    %1389 = vmatprep.mubr.bf16.mxu0 %v986
    %1390 = vmatmul.mubr.bf16.gmra.mrb[0].mxu0 %v985
    %v1391 = vpop.f32.mrb[0].mxu0
    %v1392 = vadd.f32 %v1060, %v1391
    %v1393 = vpop.f32.mrb[0].mxu0
    %v1394 = vadd.f32 %v1064, %v1393
    %v1395 = vpop.f32.mrb[0].mxu0
    %v1396 = vadd.f32 %v1060, %v1395
    %v1397 = vpop.f32.mrb[0].mxu0
    %v1398 = vadd.f32 %v1064, %v1397
    %1399 = vmatprep.mubr.bf16.mxu0 %v988
    %1400 = vmatmul.mubr.bf16.gmra.mrb[0].mxu0 %v987
    %v1401 = vpop.f32.mrb[0].mxu0
    %v1402 = vadd.f32 %v1060, %v1401
    %v1403 = vpop.f32.mrb[0].mxu0
    %v1404 = vadd.f32 %v1064, %v1403
    %v1405 = vpop.f32.mrb[0].mxu0
    %v1406 = vadd.f32 %v1060, %v1405
    %v1407 = vpop.f32.mrb[0].mxu0
    %v1408 = vadd.f32 %v1064, %v1407
    %1409 = vmatprep.mubr.bf16.mxu0 %v990
    %1410 = vmatmul.mubr.bf16.gmra.mrb[0].mxu0 %v989
    %v1411 = vpop.f32.mrb[0].mxu0
    %v1412 = vadd.f32 %v1060, %v1411
    %v1413 = vpop.f32.mrb[0].mxu0
    %v1414 = vadd.f32 %v1064, %v1413
    %v1415 = vpop.f32.mrb[0].mxu0
    %v1416 = vadd.f32 %v1060, %v1415
    %v1417 = vpop.f32.mrb[0].mxu0
    %v1418 = vadd.f32 %v1064, %v1417
    %1419 = vmatprep.mubr.bf16.mxu0 %v992
    %1420 = vmatmul.mubr.bf16.gmra.mrb[0].mxu0 %v991
    %v1421 = vpop.f32.mrb[0].mxu0
    %v1422 = vadd.f32 %v1060, %v1421
    %v1423 = vpop.f32.mrb[0].mxu0
    %v1424 = vadd.f32 %v1064, %v1423
    %v1425 = vpop.f32.mrb[0].mxu0
    %v1426 = vadd.f32 %v1060, %v1425
    %v1427 = vpop.f32.mrb[0].mxu0
    %v1428 = vadd.f32 %v1064, %v1427
    %1429 = vmatprep.mubr.bf16.mxu0 %v994
    %1430 = vmatmul.mubr.bf16.gmra.mrb[0].mxu0 %v993
    %v1431 = vpop.f32.mrb[0].mxu0
    %v1432 = vadd.f32 %v1060, %v1431
    %v1433 = vpop.f32.mrb[0].mxu0
    %v1434 = vadd.f32 %v1064, %v1433
    %v1435 = vpop.f32.mrb[0].mxu0
    %v1436 = vadd.f32 %v1060, %v1435
    %v1437 = vpop.f32.mrb[0].mxu0
    %v1438 = vadd.f32 %v1064, %v1437
    %1439 = vmatprep.mubr.bf16.mxu0 %v996
    %1440 = vmatmul.mubr.bf16.gmra.mrb[0].mxu0 %v995
    %v1441 = vpop.f32.mrb[0].mxu0
    %v1442 = vadd.f32 %v1060, %v1441
    %v1443 = vpop.f32.mrb[0].mxu0
    %v1444 = vadd.f32 %v1064, %v1443
    %v1445 = vpop.f32.mrb[0].mxu0
    %v1446 = vadd.f32 %v1060, %v1445
    %v1447 = vpop.f32.mrb[0].mxu0
    %v1448 = vadd.f32 %v1064, %v1447
    %1449 = vmatprep.mubr.bf16.mxu0 %v998
    %1450 = vmatmul.mubr.bf16.gmra.mrb[0].mxu0 %v997
    %v1451 = vpop.f32.mrb[0].mxu0
    %v1452 = vadd.f32 %v1060, %v1451
    %v1453 = vpop.f32.mrb[0].mxu0
    %v1454 = vadd.f32 %v1064, %v1453
    %v1455 = vpop.f32.mrb[0].mxu0
    %v1456 = vadd.f32 %v1060, %v1455
    %v1457 = vpop.f32.mrb[0].mxu0
    %v1458 = vadd.f32 %v1064, %v1457
    %1459 = vmatprep.mubr.bf16.mxu0 %v1000
    %1460 = vmatmul.mubr.bf16.gmra.mrb[0].mxu0 %v999
    %v1461 = vpop.f32.mrb[0].mxu0
    %v1462 = vadd.f32 %v1060, %v1461
    %v1463 = vpop.f32.mrb[0].mxu0
    %v1464 = vadd.f32 %v1064, %v1463
    %v1465 = vpop.f32.mrb[0].mxu0
    %v1466 = vadd.f32 %v1060, %v1465
    %v1467 = vpop.f32.mrb[0].mxu0
    %v1468 = vadd.f32 %v1064, %v1467
    %1469 = vmatprep.mubr.bf16.mxu0 %v1002
    %1470 = vmatmul.mubr.bf16.gmra.mrb[0].mxu0 %v1001
    %v1471 = vpop.f32.mrb[0].mxu0
    %v1472 = vadd.f32 %v1060, %v1471
    %v1473 = vpop.f32.mrb[0].mxu0
    %v1474 = vadd.f32 %v1064, %v1473
    %v1475 = vpop.f32.mrb[0].mxu0
    %v1476 = vadd.f32 %v1060, %v1475
    %v1477 = vpop.f32.mrb[0].mxu0
    %v1478 = vadd.f32 %v1064, %v1477
    %1479 = vmatprep.mubr.bf16.mxu0 %v1004
    %1480 = vmatmul.mubr.bf16.gmra.mrb[0].mxu0 %v1003
    %v1481 = vpop.f32.mrb[0].mxu0
    %v1482 = vadd.f32 %v1060, %v1481
    %v1483 = vpop.f32.mrb[0].mxu0
    %v1484 = vadd.f32 %v1064, %v1483
    %v1485 = vpop.f32.mrb[0].mxu0
    %v1486 = vadd.f32 %v1060, %v1485
    %v1487 = vpop.f32.mrb[0].mxu0
    %v1488 = vadd.f32 %v1064, %v1487
    %1489 = vmatprep.mubr.bf16.mxu0 %v1006
    %1490 = vmatmul.mubr.bf16.gmra.mrb[0].mxu0 %v1005
    %v1491 = vpop.f32.mrb[0].mxu0
    %v1492 = vadd.f32 %v1060, %v1491
    %v1493 = vpop.f32.mrb[0].mxu0
    %v1494 = vadd.f32 %v1064, %v1493
    %v1495 = vpop.f32.mrb[0].mxu0
    %v1496 = vadd.f32 %v1060, %v1495
    %v1497 = vpop.f32.mrb[0].mxu0
    %v1498 = vadd.f32 %v1064, %v1497
    %1499 = vmatprep.mubr.bf16.mxu0 %v1008
    %1500 = vmatmul.mubr.bf16.gmra.mrb[0].mxu0 %v1007
    %v1501 = vpop.f32.mrb[0].mxu0
    %v1502 = vadd.f32 %v1060, %v1501
    %v1503 = vpop.f32.mrb[0].mxu0
    %v1504 = vadd.f32 %v1064, %v1503
    %v1505 = vpop.f32.mrb[0].mxu0
    %v1506 = vadd.f32 %v1060, %v1505
    %v1507 = vpop.f32.mrb[0].mxu0
    %v1508 = vadd.f32 %v1064, %v1507
    %1509 = vmatprep.mubr.bf16.mxu0 %v1010
    %1510 = vmatmul.mubr.bf16.gmra.mrb[0].mxu0 %v1009
    %v1511 = vpop.f32.mrb[0].mxu0
    %v1512 = vadd.f32 %v1060, %v1511
    %v1513 = vpop.f32.mrb[0].mxu0
    %v1514 = vadd.f32 %v1064, %v1513
    %v1515 = vpop.f32.mrb[0].mxu0
    %v1516 = vadd.f32 %v1060, %v1515
    %v1517 = vpop.f32.mrb[0].mxu0
    %v1518 = vadd.f32 %v1064, %v1517
    %1519 = vmatprep.mubr.bf16.mxu0 %v1012
    %1520 = vmatmul.mubr.bf16.gmra.mrb[0].mxu0 %v1011
    %v1521 = vpop.f32.mrb[0].mxu0
    %v1522 = vadd.f32 %v1060, %v1521
    %v1523 = vpop.f32.mrb[0].mxu0
    %v1524 = vadd.f32 %v1064, %v1523
    %v1525 = vpop.f32.mrb[0].mxu0
    %v1526 = vadd.f32 %v1060, %v1525
    %v1527 = vpop.f32.mrb[0].mxu0
    %v1528 = vadd.f32 %v1064, %v1527
    %1529 = vmatprep.mubr.bf16.mxu0 %v1014
    %1530 = vmatmul.mubr.bf16.gmra.mrb[0].mxu0 %v1013
    %v1531 = vpop.f32.mrb[0].mxu0
    %v1532 = vadd.f32 %v1060, %v1531
    %v1533 = vpop.f32.mrb[0].mxu0
    %v1534 = vadd.f32 %v1064, %v1533
    %v1535 = vpop.f32.mrb[0].mxu0
    %v1536 = vadd.f32 %v1060, %v1535
    %v1537 = vpop.f32.mrb[0].mxu0
    %v1538 = vadd.f32 %v1064, %v1537
    %1539 = vmatprep.mubr.bf16.mxu0 %v1016
    %1540 = vmatmul.mubr.bf16.gmra.mrb[0].mxu0 %v1015
    %v1541 = vpop.f32.mrb[0].mxu0
    %v1542 = vadd.f32 %v1060, %v1541
    %v1543 = vpop.f32.mrb[0].mxu0
    %v1544 = vadd.f32 %v1064, %v1543
    %v1545 = vpop.f32.mrb[0].mxu0
    %v1546 = vadd.f32 %v1060, %v1545
    %v1547 = vpop.f32.mrb[0].mxu0
    %v1548 = vadd.f32 %v1064, %v1547
    %1549 = vmatprep.mubr.bf16.mxu0 %v1018
    %1550 = vmatmul.mubr.bf16.gmra.mrb[0].mxu0 %v1017
    %v1551 = vpop.f32.mrb[0].mxu0
    %v1552 = vadd.f32 %v1060, %v1551
    %v1553 = vpop.f32.mrb[0].mxu0
    %v1554 = vadd.f32 %v1064, %v1553
    %v1555 = vpop.f32.mrb[0].mxu0
    %v1556 = vadd.f32 %v1060, %v1555
    %v1557 = vpop.f32.mrb[0].mxu0
    %v1558 = vadd.f32 %v1064, %v1557
    %1559 = vmatprep.mubr.bf16.mxu0 %v1020
    %1560 = vmatmul.mubr.bf16.gmra.mrb[0].mxu0 %v1019
    %v1561 = vpop.f32.mrb[0].mxu0
    %v1562 = vadd.f32 %v1060, %v1561
    %v1563 = vpop.f32.mrb[0].mxu0
    %v1564 = vadd.f32 %v1064, %v1563
    %v1565 = vpop.f32.mrb[0].mxu0
    %v1566 = vadd.f32 %v1060, %v1565
    %v1567 = vpop.f32.mrb[0].mxu0
    %v1568 = vadd.f32 %v1064, %v1567
    %1569 = vmatprep.mubr.bf16.mxu0 %v1022
    %1570 = vmatmul.mubr.bf16.gmra.mrb[0].mxu0 %v1021
    %v1571 = vpop.f32.mrb[0].mxu0
    %v1572 = vadd.f32 %v1060, %v1571
    %v1573 = vpop.f32.mrb[0].mxu0
    %v1574 = vadd.f32 %v1064, %v1573
    %v1575 = vpop.f32.mrb[0].mxu0
    %v1576 = vadd.f32 %v1060, %v1575
    %v1577 = vpop.f32.mrb[0].mxu0
    %v1578 = vadd.f32 %v1064, %v1577
    %1579 = vdwg.mxu0
    %v1580 = vtanh.pop %v1262
    %v1581 = vtanh.pop %v1264
    %v1582 = vtanh.pop %v1266
    %v1583 = vtanh.pop %v1268
    %v1584 = vtanh.pop %v1272
    %v1585 = vtanh.pop %v1274
    %v1586 = vtanh.pop %v1276
    %v1587 = vtanh.pop %v1278
    %v1588 = vtanh.pop %v1282
    %v1589 = vtanh.pop %v1284
    %v1590 = vtanh.pop %v1286
    %v1591 = vtanh.pop %v1288
    %v1592 = vtanh.pop %v1292
    %v1593 = vtanh.pop %v1294
    %v1594 = vtanh.pop %v1296
    %v1595 = vtanh.pop %v1298
    %v1596 = vtanh.pop %v1302
    %v1597 = vtanh.pop %v1304
    %v1598 = vtanh.pop %v1306
    %v1599 = vtanh.pop %v1308
    %v1600 = vtanh.pop %v1312
    %v1601 = vtanh.pop %v1314
    %v1602 = vtanh.pop %v1316
    %v1603 = vtanh.pop %v1318
    %v1604 = vtanh.pop %v1322
    %v1605 = vtanh.pop %v1324
    %v1606 = vtanh.pop %v1326
    %v1607 = vtanh.pop %v1328
    %v1608 = vtanh.pop %v1332
    %v1609 = vtanh.pop %v1334
    %v1610 = vtanh.pop %v1336
    %v1611 = vtanh.pop %v1338
    %v1612 = vtanh.pop %v1342
    %v1613 = vtanh.pop %v1344
    %v1614 = vtanh.pop %v1346
    %v1615 = vtanh.pop %v1348
    %v1616 = vtanh.pop %v1352
    %v1617 = vtanh.pop %v1354
    %v1618 = vtanh.pop %v1356
    %v1619 = vtanh.pop %v1358
    %v1620 = vtanh.pop %v1362
    %v1621 = vtanh.pop %v1364
    %v1622 = vtanh.pop %v1366
    %v1623 = vtanh.pop %v1368
    %v1624 = vtanh.pop %v1372
    %v1625 = vtanh.pop %v1374
    %v1626 = vtanh.pop %v1376
    %v1627 = vtanh.pop %v1378
    %v1628 = vtanh.pop %v1382
    %v1629 = vtanh.pop %v1384
    %v1630 = vtanh.pop %v1386
    %v1631 = vtanh.pop %v1388
    %v1632 = vtanh.pop %v1392
    %v1633 = vtanh.pop %v1394
    %v1634 = vtanh.pop %v1396
    %v1635 = vtanh.pop %v1398
    %v1636 = vtanh.pop %v1402
    %v1637 = vtanh.pop %v1404
    %v1638 = vtanh.pop %v1406
    %v1639 = vtanh.pop %v1408
    %v1640 = vtanh.pop %v1412
    %v1641 = vtanh.pop %v1414
    %v1642 = vtanh.pop %v1416
    %v1643 = vtanh.pop %v1418
    %v1644 = vtanh.pop %v1422
    %v1645 = vtanh.pop %v1424
    %v1646 = vtanh.pop %v1426
    %v1647 = vtanh.pop %v1428
    %v1648 = vtanh.pop %v1432
    %v1649 = vtanh.pop %v1434
    %v1650 = vtanh.pop %v1436
    %v1651 = vtanh.pop %v1438
    %v1652 = vtanh.pop %v1442
    %v1653 = vtanh.pop %v1444
    %v1654 = vtanh.pop %v1446
    %v1655 = vtanh.pop %v1448
    %v1656 = vtanh.pop %v1452
    %v1657 = vtanh.pop %v1454
    %v1658 = vtanh.pop %v1456
    %v1659 = vtanh.pop %v1458
    %v1660 = vtanh.pop %v1462
    %v1661 = vtanh.pop %v1464
    %v1662 = vtanh.pop %v1466
    %v1663 = vtanh.pop %v1468
    %v1664 = vtanh.pop %v1472
    %v1665 = vtanh.pop %v1474
    %v1666 = vtanh.pop %v1476
    %v1667 = vtanh.pop %v1478
    %v1668 = vtanh.pop %v1482
    %v1669 = vtanh.pop %v1484
    %v1670 = vtanh.pop %v1486
    %v1671 = vtanh.pop %v1488
    %v1672 = vtanh.pop %v1492
    %v1673 = vtanh.pop %v1494
    %v1674 = vtanh.pop %v1496
    %v1675 = vtanh.pop %v1498
    %v1676 = vtanh.pop %v1502
    %v1677 = vtanh.pop %v1504
    %v1678 = vtanh.pop %v1506
    %v1679 = vtanh.pop %v1508
    %v1680 = vtanh.pop %v1512
    %v1681 = vtanh.pop %v1514
    %v1682 = vtanh.pop %v1516
    %v1683 = vtanh.pop %v1518
    %v1684 = vtanh.pop %v1522
    %v1685 = vtanh.pop %v1524
    %v1686 = vtanh.pop %v1526
    %v1687 = vtanh.pop %v1528
    %v1688 = vtanh.pop %v1532
    %v1689 = vtanh.pop %v1534
    %v1690 = vtanh.pop %v1536
    %v1691 = vtanh.pop %v1538
    %v1692 = vtanh.pop %v1542
    %v1693 = vtanh.pop %v1544
    %v1694 = vtanh.pop %v1546
    %v1695 = vtanh.pop %v1548
    %v1696 = vtanh.pop %v1552
    %v1697 = vtanh.pop %v1554
    %v1698 = vtanh.pop %v1556
    %v1699 = vtanh.pop %v1558
    %v1700 = vtanh.pop %v1562
    %v1701 = vtanh.pop %v1564
    %v1702 = vtanh.pop %v1566
    %v1703 = vtanh.pop %v1568
    %v1704 = vtanh.pop %v1572
    %v1705 = vtanh.pop %v1574
    %v1706 = vtanh.pop %v1576
    %v1707 = vtanh.pop %v1578
    %v1708 = vpack.c.bf16 %v1582, %v1580
    %v1709 = vpack.c.bf16 %v1583, %v1581
    %v1710 = vpack.c.bf16 %v1586, %v1584
    %v1711 = vpack.c.bf16 %v1587, %v1585
    %v1712 = vpack.c.bf16 %v1590, %v1588
    %v1713 = vpack.c.bf16 %v1591, %v1589
    %v1714 = vpack.c.bf16 %v1594, %v1592
    %v1715 = vpack.c.bf16 %v1595, %v1593
    %v1716 = vpack.c.bf16 %v1598, %v1596
    %v1717 = vpack.c.bf16 %v1599, %v1597
    %v1718 = vpack.c.bf16 %v1602, %v1600
    %v1719 = vpack.c.bf16 %v1603, %v1601
    %v1720 = vpack.c.bf16 %v1606, %v1604
    %v1721 = vpack.c.bf16 %v1607, %v1605
    %v1722 = vpack.c.bf16 %v1610, %v1608
    %v1723 = vpack.c.bf16 %v1611, %v1609
    %v1724 = vpack.c.bf16 %v1614, %v1612
    %v1725 = vpack.c.bf16 %v1615, %v1613
    %v1726 = vpack.c.bf16 %v1618, %v1616
    %v1727 = vpack.c.bf16 %v1619, %v1617
    %v1728 = vpack.c.bf16 %v1622, %v1620
    %v1729 = vpack.c.bf16 %v1623, %v1621
    %v1730 = vpack.c.bf16 %v1626, %v1624
    %v1731 = vpack.c.bf16 %v1627, %v1625
    %v1732 = vpack.c.bf16 %v1630, %v1628
    %v1733 = vpack.c.bf16 %v1631, %v1629
    %v1734 = vpack.c.bf16 %v1634, %v1632
    %v1735 = vpack.c.bf16 %v1635, %v1633
    %v1736 = vpack.c.bf16 %v1638, %v1636
    %v1737 = vpack.c.bf16 %v1639, %v1637
    %v1738 = vpack.c.bf16 %v1642, %v1640
    %v1739 = vpack.c.bf16 %v1643, %v1641
    %v1740 = vpack.c.bf16 %v1646, %v1644
    %v1741 = vpack.c.bf16 %v1647, %v1645
    %v1742 = vpack.c.bf16 %v1650, %v1648
    %v1743 = vpack.c.bf16 %v1651, %v1649
    %v1744 = vpack.c.bf16 %v1654, %v1652
    %v1745 = vpack.c.bf16 %v1655, %v1653
    %v1746 = vpack.c.bf16 %v1658, %v1656
    %v1747 = vpack.c.bf16 %v1659, %v1657
    %v1748 = vpack.c.bf16 %v1662, %v1660
    %v1749 = vpack.c.bf16 %v1663, %v1661
    %v1750 = vpack.c.bf16 %v1666, %v1664
    %v1751 = vpack.c.bf16 %v1667, %v1665
    %v1752 = vpack.c.bf16 %v1670, %v1668
    %v1753 = vpack.c.bf16 %v1671, %v1669
    %v1754 = vpack.c.bf16 %v1674, %v1672
    %v1755 = vpack.c.bf16 %v1675, %v1673
    %v1756 = vpack.c.bf16 %v1678, %v1676
    %v1757 = vpack.c.bf16 %v1679, %v1677
    %v1758 = vpack.c.bf16 %v1682, %v1680
    %v1759 = vpack.c.bf16 %v1683, %v1681
    %v1760 = vpack.c.bf16 %v1686, %v1684
    %v1761 = vpack.c.bf16 %v1687, %v1685
    %v1762 = vpack.c.bf16 %v1690, %v1688
    %v1763 = vpack.c.bf16 %v1691, %v1689
    %v1764 = vpack.c.bf16 %v1694, %v1692
    %v1765 = vpack.c.bf16 %v1695, %v1693
    %v1766 = vpack.c.bf16 %v1698, %v1696
    %v1767 = vpack.c.bf16 %v1699, %v1697
    %v1768 = vpack.c.bf16 %v1702, %v1700
    %v1769 = vpack.c.bf16 %v1703, %v1701
    %v1770 = vpack.c.bf16 %v1706, %v1704
    %v1771 = vpack.c.bf16 %v1707, %v1705
    %v1772 = vld [vmem:[#allocation8] sm:$0xff]
    %v1773 = vld [vmem:[#allocation8 + $0x8] sm:$0xff]
    %v1774 = vld [vmem:[#allocation8 + $0x10] sm:$0xff]
    %v1775 = vld [vmem:[#allocation8 + $0x18] sm:$0xff]
    %v1776 = vld [vmem:[#allocation8 + $0x20] sm:$0xff]
    %v1777 = vld [vmem:[#allocation8 + $0x28] sm:$0xff]
    %v1778 = vld [vmem:[#allocation8 + $0x30] sm:$0xff]
    %v1779 = vld [vmem:[#allocation8 + $0x38] sm:$0xff]
    %v1780 = vld [vmem:[#allocation8 + $0x40] sm:$0xff]
    %v1781 = vld [vmem:[#allocation8 + $0x48] sm:$0xff]
    %v1782 = vld [vmem:[#allocation8 + $0x50] sm:$0xff]
    %v1783 = vld [vmem:[#allocation8 + $0x58] sm:$0xff]
    %v1784 = vld [vmem:[#allocation8 + $0x60] sm:$0xff]
    %v1785 = vld [vmem:[#allocation8 + $0x68] sm:$0xff]
    %v1786 = vld [vmem:[#allocation8 + $0x70] sm:$0xff]
    %v1787 = vld [vmem:[#allocation8 + $0x78] sm:$0xff]
    %v1788 = vld [vmem:[#allocation8 + $0x80] sm:$0xff]
    %v1789 = vld [vmem:[#allocation8 + $0x88] sm:$0xff]
    %v1790 = vld [vmem:[#allocation8 + $0x90] sm:$0xff]
    %v1791 = vld [vmem:[#allocation8 + $0x98] sm:$0xff]
    %v1792 = vld [vmem:[#allocation8 + $0xa0] sm:$0xff]
    %v1793 = vld [vmem:[#allocation8 + $0xa8] sm:$0xff]
    %v1794 = vld [vmem:[#allocation8 + $0xb0] sm:$0xff]
    %v1795 = vld [vmem:[#allocation8 + $0xb8] sm:$0xff]
    %v1796 = vld [vmem:[#allocation8 + $0xc0] sm:$0xff]
    %v1797 = vld [vmem:[#allocation8 + $0xc8] sm:$0xff]
    %v1798 = vld [vmem:[#allocation8 + $0xd0] sm:$0xff]
    %v1799 = vld [vmem:[#allocation8 + $0xd8] sm:$0xff]
    %v1800 = vld [vmem:[#allocation8 + $0xe0] sm:$0xff]
    %v1801 = vld [vmem:[#allocation8 + $0xe8] sm:$0xff]
    %v1802 = vld [vmem:[#allocation8 + $0xf0] sm:$0xff]
    %v1803 = vld [vmem:[#allocation8 + $0xf8] sm:$0xff]
    %v1804 = vld [vmem:[%s6] sm:$0x3]
    %v1806 = vlaneseq
    %v1807 = vshrl.u32 %v1806, 7
    %v1808 = vsub.s32 0, %v1807
    %v1809 = vrot.slane %v1804, %v1808
    %v1810 = vlaneseq
    %v1811 = vshrl.u32 %v1810, 7
    %v1812 = vsub.s32 1, %v1811
    %v1813 = vrot.slane %v1804, %v1812
    %v1848 = vunpack.c.l.b16 %v1772
    %v1849 = vunpack.c.h.b16 %v1772
    %v1850 = vunpack.c.l.b16 %v1773
    %v1851 = vunpack.c.h.b16 %v1773
    %v1852 = vunpack.c.l.b16 %v1774
    %v1853 = vunpack.c.h.b16 %v1774
    %v1854 = vunpack.c.l.b16 %v1775
    %v1855 = vunpack.c.h.b16 %v1775
    %v1856 = vunpack.c.l.b16 %v1776
    %v1857 = vunpack.c.h.b16 %v1776
    %v1858 = vunpack.c.l.b16 %v1777
    %v1859 = vunpack.c.h.b16 %v1777
    %v1860 = vunpack.c.l.b16 %v1778
    %v1861 = vunpack.c.h.b16 %v1778
    %v1862 = vunpack.c.l.b16 %v1779
    %v1863 = vunpack.c.h.b16 %v1779
    %v1864 = vunpack.c.l.b16 %v1780
    %v1865 = vunpack.c.h.b16 %v1780
    %v1866 = vunpack.c.l.b16 %v1781
    %v1867 = vunpack.c.h.b16 %v1781
    %v1868 = vunpack.c.l.b16 %v1782
    %v1869 = vunpack.c.h.b16 %v1782
    %v1870 = vunpack.c.l.b16 %v1783
    %v1871 = vunpack.c.h.b16 %v1783
    %v1872 = vunpack.c.l.b16 %v1784
    %v1873 = vunpack.c.h.b16 %v1784
    %v1874 = vunpack.c.l.b16 %v1785
    %v1875 = vunpack.c.h.b16 %v1785
    %v1876 = vunpack.c.l.b16 %v1786
    %v1877 = vunpack.c.h.b16 %v1786
    %v1878 = vunpack.c.l.b16 %v1787
    %v1879 = vunpack.c.h.b16 %v1787
    %v1880 = vunpack.c.l.b16 %v1788
    %v1881 = vunpack.c.h.b16 %v1788
    %v1882 = vunpack.c.l.b16 %v1789
    %v1883 = vunpack.c.h.b16 %v1789
    %v1884 = vunpack.c.l.b16 %v1790
    %v1885 = vunpack.c.h.b16 %v1790
    %v1886 = vunpack.c.l.b16 %v1791
    %v1887 = vunpack.c.h.b16 %v1791
    %v1888 = vunpack.c.l.b16 %v1792
    %v1889 = vunpack.c.h.b16 %v1792
    %v1890 = vunpack.c.l.b16 %v1793
    %v1891 = vunpack.c.h.b16 %v1793
    %v1892 = vunpack.c.l.b16 %v1794
    %v1893 = vunpack.c.h.b16 %v1794
    %v1894 = vunpack.c.l.b16 %v1795
    %v1895 = vunpack.c.h.b16 %v1795
    %v1896 = vunpack.c.l.b16 %v1796
    %v1897 = vunpack.c.h.b16 %v1796
    %v1898 = vunpack.c.l.b16 %v1797
    %v1899 = vunpack.c.h.b16 %v1797
    %v1900 = vunpack.c.l.b16 %v1798
    %v1901 = vunpack.c.h.b16 %v1798
    %v1902 = vunpack.c.l.b16 %v1799
    %v1903 = vunpack.c.h.b16 %v1799
    %v1904 = vunpack.c.l.b16 %v1800
    %v1905 = vunpack.c.h.b16 %v1800
    %v1906 = vunpack.c.l.b16 %v1801
    %v1907 = vunpack.c.h.b16 %v1801
    %v1908 = vunpack.c.l.b16 %v1802
    %v1909 = vunpack.c.h.b16 %v1802
    %v1910 = vunpack.c.l.b16 %v1803
    %v1911 = vunpack.c.h.b16 %v1803
    %v1912 = vpack.c.b16 %v1850, %v1848
    %v1913 = vpack.c.b16 %v1851, %v1849
    %v1914 = vpack.c.b16 %v1854, %v1852
    %v1915 = vpack.c.b16 %v1855, %v1853
    %v1916 = vpack.c.b16 %v1858, %v1856
    %v1917 = vpack.c.b16 %v1859, %v1857
    %v1918 = vpack.c.b16 %v1862, %v1860
    %v1919 = vpack.c.b16 %v1863, %v1861
    %v1920 = vpack.c.b16 %v1866, %v1864
    %v1921 = vpack.c.b16 %v1867, %v1865
    %v1922 = vpack.c.b16 %v1870, %v1868
    %v1923 = vpack.c.b16 %v1871, %v1869
    %v1924 = vpack.c.b16 %v1874, %v1872
    %v1925 = vpack.c.b16 %v1875, %v1873
    %v1926 = vpack.c.b16 %v1878, %v1876
    %v1927 = vpack.c.b16 %v1879, %v1877
    %v1928 = vpack.c.b16 %v1882, %v1880
    %v1929 = vpack.c.b16 %v1883, %v1881
    %v1930 = vpack.c.b16 %v1886, %v1884
    %v1931 = vpack.c.b16 %v1887, %v1885
    %v1932 = vpack.c.b16 %v1890, %v1888
    %v1933 = vpack.c.b16 %v1891, %v1889
    %v1934 = vpack.c.b16 %v1894, %v1892
    %v1935 = vpack.c.b16 %v1895, %v1893
    %v1936 = vpack.c.b16 %v1898, %v1896
    %v1937 = vpack.c.b16 %v1899, %v1897
    %v1938 = vpack.c.b16 %v1902, %v1900
    %v1939 = vpack.c.b16 %v1903, %v1901
    %v1940 = vpack.c.b16 %v1906, %v1904
    %v1941 = vpack.c.b16 %v1907, %v1905
    %v1942 = vpack.c.b16 %v1910, %v1908
    %v1943 = vpack.c.b16 %v1911, %v1909
    %1976 = vmatprep.subr.bf16.mxu0 %v1913
    %1977 = vmatpush1.bf16.msra.mxu0 %v1912
    %1978 = vmatprep.subr.bf16.mxu0 %v1915
    %1979 = vmatpush1.bf16.msra.mxu0 %v1914
    %1980 = vmatprep.subr.bf16.mxu0 %v1917
    %1981 = vmatpush1.bf16.msra.mxu0 %v1916
    %1982 = vmatprep.subr.bf16.mxu0 %v1919
    %1983 = vmatpush1.bf16.msra.mxu0 %v1918
    %1984 = vmatprep.subr.bf16.mxu0 %v1921
    %1985 = vmatpush1.bf16.msra.mxu0 %v1920
    %1986 = vmatprep.subr.bf16.mxu0 %v1923
    %1987 = vmatpush1.bf16.msra.mxu0 %v1922
    %1988 = vmatprep.subr.bf16.mxu0 %v1925
    %1989 = vmatpush1.bf16.msra.mxu0 %v1924
    %1990 = vmatprep.subr.bf16.mxu0 %v1927
    %1991 = vmatpush1.bf16.msra.mxu0 %v1926
    %1992 = vmatprep.subr.bf16.mxu0 %v1929
    %1993 = vmatpush1.bf16.msra.mxu0 %v1928
    %1994 = vmatprep.subr.bf16.mxu0 %v1931
    %1995 = vmatpush1.bf16.msra.mxu0 %v1930
    %1996 = vmatprep.subr.bf16.mxu0 %v1933
    %1997 = vmatpush1.bf16.msra.mxu0 %v1932
    %1998 = vmatprep.subr.bf16.mxu0 %v1935
    %1999 = vmatpush1.bf16.msra.mxu0 %v1934
    %2000 = vmatprep.subr.bf16.mxu0 %v1937
    %2001 = vmatpush1.bf16.msra.mxu0 %v1936
    %2002 = vmatprep.subr.bf16.mxu0 %v1939
    %2003 = vmatpush1.bf16.msra.mxu0 %v1938
    %2004 = vmatprep.subr.bf16.mxu0 %v1941
    %2005 = vmatpush1.bf16.msra.mxu0 %v1940
    %2006 = vmatprep.subr.bf16.mxu0 %v1943
    %2007 = vmatpush1.bf16.msra.mxu0 %v1942
    %2008 = vmatprep.mubr.bf16.mxu0 %v1709
    %2009 = vmatmul.mubr.bf16.gmra.mrb[0].mxu0 %v1708
    %v2010 = vpop.f32.mrb[0].mxu0
    %v2011 = vadd.f32 %v1809, %v2010
    %v2012 = vpop.f32.mrb[0].mxu0
    %v2013 = vadd.f32 %v1813, %v2012
    %v2014 = vpop.f32.mrb[0].mxu0
    %v2015 = vadd.f32 %v1809, %v2014
    %v2016 = vpop.f32.mrb[0].mxu0
    %v2017 = vadd.f32 %v1813, %v2016
    %2018 = vmatprep.mubr.bf16.mxu0 %v1711
    %2019 = vmatmul.mubr.bf16.gmra.mrb[0].mxu0 %v1710
    %v2020 = vpop.f32.mrb[0].mxu0
    %v2021 = vadd.f32 %v1809, %v2020
    %v2022 = vpop.f32.mrb[0].mxu0
    %v2023 = vadd.f32 %v1813, %v2022
    %v2024 = vpop.f32.mrb[0].mxu0
    %v2025 = vadd.f32 %v1809, %v2024
    %v2026 = vpop.f32.mrb[0].mxu0
    %v2027 = vadd.f32 %v1813, %v2026
    %2028 = vmatprep.mubr.bf16.mxu0 %v1713
    %2029 = vmatmul.mubr.bf16.gmra.mrb[0].mxu0 %v1712
    %v2030 = vpop.f32.mrb[0].mxu0
    %v2031 = vadd.f32 %v1809, %v2030
    %v2032 = vpop.f32.mrb[0].mxu0
    %v2033 = vadd.f32 %v1813, %v2032
    %v2034 = vpop.f32.mrb[0].mxu0
    %v2035 = vadd.f32 %v1809, %v2034
    %v2036 = vpop.f32.mrb[0].mxu0
    %v2037 = vadd.f32 %v1813, %v2036
    %2038 = vmatprep.mubr.bf16.mxu0 %v1715
    %2039 = vmatmul.mubr.bf16.gmra.mrb[0].mxu0 %v1714
    %v2040 = vpop.f32.mrb[0].mxu0
    %v2041 = vadd.f32 %v1809, %v2040
    %v2042 = vpop.f32.mrb[0].mxu0
    %v2043 = vadd.f32 %v1813, %v2042
    %v2044 = vpop.f32.mrb[0].mxu0
    %v2045 = vadd.f32 %v1809, %v2044
    %v2046 = vpop.f32.mrb[0].mxu0
    %v2047 = vadd.f32 %v1813, %v2046
    %2048 = vmatprep.mubr.bf16.mxu0 %v1717
    %2049 = vmatmul.mubr.bf16.gmra.mrb[0].mxu0 %v1716
    %v2050 = vpop.f32.mrb[0].mxu0
    %v2051 = vadd.f32 %v1809, %v2050
    %v2052 = vpop.f32.mrb[0].mxu0
    %v2053 = vadd.f32 %v1813, %v2052
    %v2054 = vpop.f32.mrb[0].mxu0
    %v2055 = vadd.f32 %v1809, %v2054
    %v2056 = vpop.f32.mrb[0].mxu0
    %v2057 = vadd.f32 %v1813, %v2056
    %2058 = vmatprep.mubr.bf16.mxu0 %v1719
    %2059 = vmatmul.mubr.bf16.gmra.mrb[0].mxu0 %v1718
    %v2060 = vpop.f32.mrb[0].mxu0
    %v2061 = vadd.f32 %v1809, %v2060
    %v2062 = vpop.f32.mrb[0].mxu0
    %v2063 = vadd.f32 %v1813, %v2062
    %v2064 = vpop.f32.mrb[0].mxu0
    %v2065 = vadd.f32 %v1809, %v2064
    %v2066 = vpop.f32.mrb[0].mxu0
    %v2067 = vadd.f32 %v1813, %v2066
    %2068 = vmatprep.mubr.bf16.mxu0 %v1721
    %2069 = vmatmul.mubr.bf16.gmra.mrb[0].mxu0 %v1720
    %v2070 = vpop.f32.mrb[0].mxu0
    %v2071 = vadd.f32 %v1809, %v2070
    %v2072 = vpop.f32.mrb[0].mxu0
    %v2073 = vadd.f32 %v1813, %v2072
    %v2074 = vpop.f32.mrb[0].mxu0
    %v2075 = vadd.f32 %v1809, %v2074
    %v2076 = vpop.f32.mrb[0].mxu0
    %v2077 = vadd.f32 %v1813, %v2076
    %2078 = vmatprep.mubr.bf16.mxu0 %v1723
    %2079 = vmatmul.mubr.bf16.gmra.mrb[0].mxu0 %v1722
    %v2080 = vpop.f32.mrb[0].mxu0
    %v2081 = vadd.f32 %v1809, %v2080
    %v2082 = vpop.f32.mrb[0].mxu0
    %v2083 = vadd.f32 %v1813, %v2082
    %v2084 = vpop.f32.mrb[0].mxu0
    %v2085 = vadd.f32 %v1809, %v2084
    %v2086 = vpop.f32.mrb[0].mxu0
    %v2087 = vadd.f32 %v1813, %v2086
    %2088 = vmatprep.mubr.bf16.mxu0 %v1725
    %2089 = vmatmul.mubr.bf16.gmra.mrb[0].mxu0 %v1724
    %v2090 = vpop.f32.mrb[0].mxu0
    %v2091 = vadd.f32 %v1809, %v2090
    %v2092 = vpop.f32.mrb[0].mxu0
    %v2093 = vadd.f32 %v1813, %v2092
    %v2094 = vpop.f32.mrb[0].mxu0
    %v2095 = vadd.f32 %v1809, %v2094
    %v2096 = vpop.f32.mrb[0].mxu0
    %v2097 = vadd.f32 %v1813, %v2096
    %2098 = vmatprep.mubr.bf16.mxu0 %v1727
    %2099 = vmatmul.mubr.bf16.gmra.mrb[0].mxu0 %v1726
    %v2100 = vpop.f32.mrb[0].mxu0
    %v2101 = vadd.f32 %v1809, %v2100
    %v2102 = vpop.f32.mrb[0].mxu0
    %v2103 = vadd.f32 %v1813, %v2102
    %v2104 = vpop.f32.mrb[0].mxu0
    %v2105 = vadd.f32 %v1809, %v2104
    %v2106 = vpop.f32.mrb[0].mxu0
    %v2107 = vadd.f32 %v1813, %v2106
    %2108 = vmatprep.mubr.bf16.mxu0 %v1729
    %2109 = vmatmul.mubr.bf16.gmra.mrb[0].mxu0 %v1728
    %v2110 = vpop.f32.mrb[0].mxu0
    %v2111 = vadd.f32 %v1809, %v2110
    %v2112 = vpop.f32.mrb[0].mxu0
    %v2113 = vadd.f32 %v1813, %v2112
    %v2114 = vpop.f32.mrb[0].mxu0
    %v2115 = vadd.f32 %v1809, %v2114
    %v2116 = vpop.f32.mrb[0].mxu0
    %v2117 = vadd.f32 %v1813, %v2116
    %2118 = vmatprep.mubr.bf16.mxu0 %v1731
    %2119 = vmatmul.mubr.bf16.gmra.mrb[0].mxu0 %v1730
    %v2120 = vpop.f32.mrb[0].mxu0
    %v2121 = vadd.f32 %v1809, %v2120
    %v2122 = vpop.f32.mrb[0].mxu0
    %v2123 = vadd.f32 %v1813, %v2122
    %v2124 = vpop.f32.mrb[0].mxu0
    %v2125 = vadd.f32 %v1809, %v2124
    %v2126 = vpop.f32.mrb[0].mxu0
    %v2127 = vadd.f32 %v1813, %v2126
    %2128 = vmatprep.mubr.bf16.mxu0 %v1733
    %2129 = vmatmul.mubr.bf16.gmra.mrb[0].mxu0 %v1732
    %v2130 = vpop.f32.mrb[0].mxu0
    %v2131 = vadd.f32 %v1809, %v2130
    %v2132 = vpop.f32.mrb[0].mxu0
    %v2133 = vadd.f32 %v1813, %v2132
    %v2134 = vpop.f32.mrb[0].mxu0
    %v2135 = vadd.f32 %v1809, %v2134
    %v2136 = vpop.f32.mrb[0].mxu0
    %v2137 = vadd.f32 %v1813, %v2136
    %2138 = vmatprep.mubr.bf16.mxu0 %v1735
    %2139 = vmatmul.mubr.bf16.gmra.mrb[0].mxu0 %v1734
    %v2140 = vpop.f32.mrb[0].mxu0
    %v2141 = vadd.f32 %v1809, %v2140
    %v2142 = vpop.f32.mrb[0].mxu0
    %v2143 = vadd.f32 %v1813, %v2142
    %v2144 = vpop.f32.mrb[0].mxu0
    %v2145 = vadd.f32 %v1809, %v2144
    %v2146 = vpop.f32.mrb[0].mxu0
    %v2147 = vadd.f32 %v1813, %v2146
    %2148 = vmatprep.mubr.bf16.mxu0 %v1737
    %2149 = vmatmul.mubr.bf16.gmra.mrb[0].mxu0 %v1736
    %v2150 = vpop.f32.mrb[0].mxu0
    %v2151 = vadd.f32 %v1809, %v2150
    %v2152 = vpop.f32.mrb[0].mxu0
    %v2153 = vadd.f32 %v1813, %v2152
    %v2154 = vpop.f32.mrb[0].mxu0
    %v2155 = vadd.f32 %v1809, %v2154
    %v2156 = vpop.f32.mrb[0].mxu0
    %v2157 = vadd.f32 %v1813, %v2156
    %2158 = vmatprep.mubr.bf16.mxu0 %v1739
    %2159 = vmatmul.mubr.bf16.gmra.mrb[0].mxu0 %v1738
    %v2160 = vpop.f32.mrb[0].mxu0
    %v2161 = vadd.f32 %v1809, %v2160
    %v2162 = vpop.f32.mrb[0].mxu0
    %v2163 = vadd.f32 %v1813, %v2162
    %v2164 = vpop.f32.mrb[0].mxu0
    %v2165 = vadd.f32 %v1809, %v2164
    %v2166 = vpop.f32.mrb[0].mxu0
    %v2167 = vadd.f32 %v1813, %v2166
    %2168 = vmatprep.mubr.bf16.mxu0 %v1741
    %2169 = vmatmul.mubr.bf16.gmra.mrb[0].mxu0 %v1740
    %v2170 = vpop.f32.mrb[0].mxu0
    %v2171 = vadd.f32 %v1809, %v2170
    %v2172 = vpop.f32.mrb[0].mxu0
    %v2173 = vadd.f32 %v1813, %v2172
    %v2174 = vpop.f32.mrb[0].mxu0
    %v2175 = vadd.f32 %v1809, %v2174
    %v2176 = vpop.f32.mrb[0].mxu0
    %v2177 = vadd.f32 %v1813, %v2176
    %2178 = vmatprep.mubr.bf16.mxu0 %v1743
    %2179 = vmatmul.mubr.bf16.gmra.mrb[0].mxu0 %v1742
    %v2180 = vpop.f32.mrb[0].mxu0
    %v2181 = vadd.f32 %v1809, %v2180
    %v2182 = vpop.f32.mrb[0].mxu0
    %v2183 = vadd.f32 %v1813, %v2182
    %v2184 = vpop.f32.mrb[0].mxu0
    %v2185 = vadd.f32 %v1809, %v2184
    %v2186 = vpop.f32.mrb[0].mxu0
    %v2187 = vadd.f32 %v1813, %v2186
    %2188 = vmatprep.mubr.bf16.mxu0 %v1745
    %2189 = vmatmul.mubr.bf16.gmra.mrb[0].mxu0 %v1744
    %v2190 = vpop.f32.mrb[0].mxu0
    %v2191 = vadd.f32 %v1809, %v2190
    %v2192 = vpop.f32.mrb[0].mxu0
    %v2193 = vadd.f32 %v1813, %v2192
    %v2194 = vpop.f32.mrb[0].mxu0
    %v2195 = vadd.f32 %v1809, %v2194
    %v2196 = vpop.f32.mrb[0].mxu0
    %v2197 = vadd.f32 %v1813, %v2196
    %2198 = vmatprep.mubr.bf16.mxu0 %v1747
    %2199 = vmatmul.mubr.bf16.gmra.mrb[0].mxu0 %v1746
    %v2200 = vpop.f32.mrb[0].mxu0
    %v2201 = vadd.f32 %v1809, %v2200
    %v2202 = vpop.f32.mrb[0].mxu0
    %v2203 = vadd.f32 %v1813, %v2202
    %v2204 = vpop.f32.mrb[0].mxu0
    %v2205 = vadd.f32 %v1809, %v2204
    %v2206 = vpop.f32.mrb[0].mxu0
    %v2207 = vadd.f32 %v1813, %v2206
    %2208 = vmatprep.mubr.bf16.mxu0 %v1749
    %2209 = vmatmul.mubr.bf16.gmra.mrb[0].mxu0 %v1748
    %v2210 = vpop.f32.mrb[0].mxu0
    %v2211 = vadd.f32 %v1809, %v2210
    %v2212 = vpop.f32.mrb[0].mxu0
    %v2213 = vadd.f32 %v1813, %v2212
    %v2214 = vpop.f32.mrb[0].mxu0
    %v2215 = vadd.f32 %v1809, %v2214
    %v2216 = vpop.f32.mrb[0].mxu0
    %v2217 = vadd.f32 %v1813, %v2216
    %2218 = vmatprep.mubr.bf16.mxu0 %v1751
    %2219 = vmatmul.mubr.bf16.gmra.mrb[0].mxu0 %v1750
    %v2220 = vpop.f32.mrb[0].mxu0
    %v2221 = vadd.f32 %v1809, %v2220
    %v2222 = vpop.f32.mrb[0].mxu0
    %v2223 = vadd.f32 %v1813, %v2222
    %v2224 = vpop.f32.mrb[0].mxu0
    %v2225 = vadd.f32 %v1809, %v2224
    %v2226 = vpop.f32.mrb[0].mxu0
    %v2227 = vadd.f32 %v1813, %v2226
    %2228 = vmatprep.mubr.bf16.mxu0 %v1753
    %2229 = vmatmul.mubr.bf16.gmra.mrb[0].mxu0 %v1752
    %v2230 = vpop.f32.mrb[0].mxu0
    %v2231 = vadd.f32 %v1809, %v2230
    %v2232 = vpop.f32.mrb[0].mxu0
    %v2233 = vadd.f32 %v1813, %v2232
    %v2234 = vpop.f32.mrb[0].mxu0
    %v2235 = vadd.f32 %v1809, %v2234
    %v2236 = vpop.f32.mrb[0].mxu0
    %v2237 = vadd.f32 %v1813, %v2236
    %2238 = vmatprep.mubr.bf16.mxu0 %v1755
    %2239 = vmatmul.mubr.bf16.gmra.mrb[0].mxu0 %v1754
    %v2240 = vpop.f32.mrb[0].mxu0
    %v2241 = vadd.f32 %v1809, %v2240
    %v2242 = vpop.f32.mrb[0].mxu0
    %v2243 = vadd.f32 %v1813, %v2242
    %v2244 = vpop.f32.mrb[0].mxu0
    %v2245 = vadd.f32 %v1809, %v2244
    %v2246 = vpop.f32.mrb[0].mxu0
    %v2247 = vadd.f32 %v1813, %v2246
    %2248 = vmatprep.mubr.bf16.mxu0 %v1757
    %2249 = vmatmul.mubr.bf16.gmra.mrb[0].mxu0 %v1756
    %v2250 = vpop.f32.mrb[0].mxu0
    %v2251 = vadd.f32 %v1809, %v2250
    %v2252 = vpop.f32.mrb[0].mxu0
    %v2253 = vadd.f32 %v1813, %v2252
    %v2254 = vpop.f32.mrb[0].mxu0
    %v2255 = vadd.f32 %v1809, %v2254
    %v2256 = vpop.f32.mrb[0].mxu0
    %v2257 = vadd.f32 %v1813, %v2256
    %2258 = vmatprep.mubr.bf16.mxu0 %v1759
    %2259 = vmatmul.mubr.bf16.gmra.mrb[0].mxu0 %v1758
    %v2260 = vpop.f32.mrb[0].mxu0
    %v2261 = vadd.f32 %v1809, %v2260
    %v2262 = vpop.f32.mrb[0].mxu0
    %v2263 = vadd.f32 %v1813, %v2262
    %v2264 = vpop.f32.mrb[0].mxu0
    %v2265 = vadd.f32 %v1809, %v2264
    %v2266 = vpop.f32.mrb[0].mxu0
    %v2267 = vadd.f32 %v1813, %v2266
    %2268 = vmatprep.mubr.bf16.mxu0 %v1761
    %2269 = vmatmul.mubr.bf16.gmra.mrb[0].mxu0 %v1760
    %v2270 = vpop.f32.mrb[0].mxu0
    %v2271 = vadd.f32 %v1809, %v2270
    %v2272 = vpop.f32.mrb[0].mxu0
    %v2273 = vadd.f32 %v1813, %v2272
    %v2274 = vpop.f32.mrb[0].mxu0
    %v2275 = vadd.f32 %v1809, %v2274
    %v2276 = vpop.f32.mrb[0].mxu0
    %v2277 = vadd.f32 %v1813, %v2276
    %2278 = vmatprep.mubr.bf16.mxu0 %v1763
    %2279 = vmatmul.mubr.bf16.gmra.mrb[0].mxu0 %v1762
    %v2280 = vpop.f32.mrb[0].mxu0
    %v2281 = vadd.f32 %v1809, %v2280
    %v2282 = vpop.f32.mrb[0].mxu0
    %v2283 = vadd.f32 %v1813, %v2282
    %v2284 = vpop.f32.mrb[0].mxu0
    %v2285 = vadd.f32 %v1809, %v2284
    %v2286 = vpop.f32.mrb[0].mxu0
    %v2287 = vadd.f32 %v1813, %v2286
    %2288 = vmatprep.mubr.bf16.mxu0 %v1765
    %2289 = vmatmul.mubr.bf16.gmra.mrb[0].mxu0 %v1764
    %v2290 = vpop.f32.mrb[0].mxu0
    %v2291 = vadd.f32 %v1809, %v2290
    %v2292 = vpop.f32.mrb[0].mxu0
    %v2293 = vadd.f32 %v1813, %v2292
    %v2294 = vpop.f32.mrb[0].mxu0
    %v2295 = vadd.f32 %v1809, %v2294
    %v2296 = vpop.f32.mrb[0].mxu0
    %v2297 = vadd.f32 %v1813, %v2296
    %2298 = vmatprep.mubr.bf16.mxu0 %v1767
    %2299 = vmatmul.mubr.bf16.gmra.mrb[0].mxu0 %v1766
    %v2300 = vpop.f32.mrb[0].mxu0
    %v2301 = vadd.f32 %v1809, %v2300
    %v2302 = vpop.f32.mrb[0].mxu0
    %v2303 = vadd.f32 %v1813, %v2302
    %v2304 = vpop.f32.mrb[0].mxu0
    %v2305 = vadd.f32 %v1809, %v2304
    %v2306 = vpop.f32.mrb[0].mxu0
    %v2307 = vadd.f32 %v1813, %v2306
    %2308 = vmatprep.mubr.bf16.mxu0 %v1769
    %2309 = vmatmul.mubr.bf16.gmra.mrb[0].mxu0 %v1768
    %v2310 = vpop.f32.mrb[0].mxu0
    %v2311 = vadd.f32 %v1809, %v2310
    %v2312 = vpop.f32.mrb[0].mxu0
    %v2313 = vadd.f32 %v1813, %v2312
    %v2314 = vpop.f32.mrb[0].mxu0
    %v2315 = vadd.f32 %v1809, %v2314
    %v2316 = vpop.f32.mrb[0].mxu0
    %v2317 = vadd.f32 %v1813, %v2316
    %2318 = vmatprep.mubr.bf16.mxu0 %v1771
    %2319 = vmatmul.mubr.bf16.gmra.mrb[0].mxu0 %v1770
    %v2320 = vpop.f32.mrb[0].mxu0
    %v2321 = vadd.f32 %v1809, %v2320
    %v2322 = vpop.f32.mrb[0].mxu0
    %v2323 = vadd.f32 %v1813, %v2322
    %v2324 = vpop.f32.mrb[0].mxu0
    %v2325 = vadd.f32 %v1809, %v2324
    %v2326 = vpop.f32.mrb[0].mxu0
    %v2327 = vadd.f32 %v1813, %v2326
    %2328 = vdwg.mxu0
    %2329 = vst [vmem:[#allocation10] sm:$0xff] %v2011
    %2330 = vst [vmem:[#allocation10 + $0x8] sm:$0xff] %v2013
    %2331 = vst [vmem:[#allocation10 + $0x10] sm:$0xff] %v2015
    %2332 = vst [vmem:[#allocation10 + $0x18] sm:$0xff] %v2017
    %2333 = vst [vmem:[#allocation10 + $0x20] sm:$0xff] %v2021
    %2334 = vst [vmem:[#allocation10 + $0x28] sm:$0xff] %v2023
    %2335 = vst [vmem:[#allocation10 + $0x30] sm:$0xff] %v2025
    %2336 = vst [vmem:[#allocation10 + $0x38] sm:$0xff] %v2027
    %2337 = vst [vmem:[#allocation10 + $0x40] sm:$0xff] %v2031
    %2338 = vst [vmem:[#allocation10 + $0x48] sm:$0xff] %v2033
    %2339 = vst [vmem:[#allocation10 + $0x50] sm:$0xff] %v2035
    %2340 = vst [vmem:[#allocation10 + $0x58] sm:$0xff] %v2037
    %2341 = vst [vmem:[#allocation10 + $0x60] sm:$0xff] %v2041
    %2342 = vst [vmem:[#allocation10 + $0x68] sm:$0xff] %v2043
    %2343 = vst [vmem:[#allocation10 + $0x70] sm:$0xff] %v2045
    %2344 = vst [vmem:[#allocation10 + $0x78] sm:$0xff] %v2047
    %2345 = vst [vmem:[#allocation10 + $0x80] sm:$0xff] %v2051
    %2346 = vst [vmem:[#allocation10 + $0x88] sm:$0xff] %v2053
    %2347 = vst [vmem:[#allocation10 + $0x90] sm:$0xff] %v2055
    %2348 = vst [vmem:[#allocation10 + $0x98] sm:$0xff] %v2057
    %2349 = vst [vmem:[#allocation10 + $0xa0] sm:$0xff] %v2061
    %2350 = vst [vmem:[#allocation10 + $0xa8] sm:$0xff] %v2063
    %2351 = vst [vmem:[#allocation10 + $0xb0] sm:$0xff] %v2065
    %2352 = vst [vmem:[#allocation10 + $0xb8] sm:$0xff] %v2067
    %2353 = vst [vmem:[#allocation10 + $0xc0] sm:$0xff] %v2071
    %2354 = vst [vmem:[#allocation10 + $0xc8] sm:$0xff] %v2073
    %2355 = vst [vmem:[#allocation10 + $0xd0] sm:$0xff] %v2075
    %2356 = vst [vmem:[#allocation10 + $0xd8] sm:$0xff] %v2077
    %2357 = vst [vmem:[#allocation10 + $0xe0] sm:$0xff] %v2081
    %2358 = vst [vmem:[#allocation10 + $0xe8] sm:$0xff] %v2083
    %2359 = vst [vmem:[#allocation10 + $0xf0] sm:$0xff] %v2085
    %2360 = vst [vmem:[#allocation10 + $0xf8] sm:$0xff] %v2087
    %2361 = vst [vmem:[#allocation10 + $0x100] sm:$0xff] %v2091
    %2362 = vst [vmem:[#allocation10 + $0x108] sm:$0xff] %v2093
    %2363 = vst [vmem:[#allocation10 + $0x110] sm:$0xff] %v2095
    %2364 = vst [vmem:[#allocation10 + $0x118] sm:$0xff] %v2097
    %2365 = vst [vmem:[#allocation10 + $0x120] sm:$0xff] %v2101
    %2366 = vst [vmem:[#allocation10 + $0x128] sm:$0xff] %v2103
    %2367 = vst [vmem:[#allocation10 + $0x130] sm:$0xff] %v2105
    %2368 = vst [vmem:[#allocation10 + $0x138] sm:$0xff] %v2107
    %2369 = vst [vmem:[#allocation10 + $0x140] sm:$0xff] %v2111
    %2370 = vst [vmem:[#allocation10 + $0x148] sm:$0xff] %v2113
    %2371 = vst [vmem:[#allocation10 + $0x150] sm:$0xff] %v2115
    %2372 = vst [vmem:[#allocation10 + $0x158] sm:$0xff] %v2117
    %2373 = vst [vmem:[#allocation10 + $0x160] sm:$0xff] %v2121
    %2374 = vst [vmem:[#allocation10 + $0x168] sm:$0xff] %v2123
    %2375 = vst [vmem:[#allocation10 + $0x170] sm:$0xff] %v2125
    %2376 = vst [vmem:[#allocation10 + $0x178] sm:$0xff] %v2127
    %2377 = vst [vmem:[#allocation10 + $0x180] sm:$0xff] %v2131
    %2378 = vst [vmem:[#allocation10 + $0x188] sm:$0xff] %v2133
    %2379 = vst [vmem:[#allocation10 + $0x190] sm:$0xff] %v2135
    %2380 = vst [vmem:[#allocation10 + $0x198] sm:$0xff] %v2137
    %2381 = vst [vmem:[#allocation10 + $0x1a0] sm:$0xff] %v2141
    %2382 = vst [vmem:[#allocation10 + $0x1a8] sm:$0xff] %v2143
    %2383 = vst [vmem:[#allocation10 + $0x1b0] sm:$0xff] %v2145
    %2384 = vst [vmem:[#allocation10 + $0x1b8] sm:$0xff] %v2147
    %2385 = vst [vmem:[#allocation10 + $0x1c0] sm:$0xff] %v2151
    %2386 = vst [vmem:[#allocation10 + $0x1c8] sm:$0xff] %v2153
    %2387 = vst [vmem:[#allocation10 + $0x1d0] sm:$0xff] %v2155
    %2388 = vst [vmem:[#allocation10 + $0x1d8] sm:$0xff] %v2157
    %2389 = vst [vmem:[#allocation10 + $0x1e0] sm:$0xff] %v2161
    %2390 = vst [vmem:[#allocation10 + $0x1e8] sm:$0xff] %v2163
    %2391 = vst [vmem:[#allocation10 + $0x1f0] sm:$0xff] %v2165
    %2392 = vst [vmem:[#allocation10 + $0x1f8] sm:$0xff] %v2167
    %2393 = vst [vmem:[#allocation10 + $0x200] sm:$0xff] %v2171
    %2394 = vst [vmem:[#allocation10 + $0x208] sm:$0xff] %v2173
    %2395 = vst [vmem:[#allocation10 + $0x210] sm:$0xff] %v2175
    %2396 = vst [vmem:[#allocation10 + $0x218] sm:$0xff] %v2177
    %2397 = vst [vmem:[#allocation10 + $0x220] sm:$0xff] %v2181
    %2398 = vst [vmem:[#allocation10 + $0x228] sm:$0xff] %v2183
    %2399 = vst [vmem:[#allocation10 + $0x230] sm:$0xff] %v2185
    %2400 = vst [vmem:[#allocation10 + $0x238] sm:$0xff] %v2187
    %2401 = vst [vmem:[#allocation10 + $0x240] sm:$0xff] %v2191
    %2402 = vst [vmem:[#allocation10 + $0x248] sm:$0xff] %v2193
    %2403 = vst [vmem:[#allocation10 + $0x250] sm:$0xff] %v2195
    %2404 = vst [vmem:[#allocation10 + $0x258] sm:$0xff] %v2197
    %2405 = vst [vmem:[#allocation10 + $0x260] sm:$0xff] %v2201
    %2406 = vst [vmem:[#allocation10 + $0x268] sm:$0xff] %v2203
    %2407 = vst [vmem:[#allocation10 + $0x270] sm:$0xff] %v2205
    %2408 = vst [vmem:[#allocation10 + $0x278] sm:$0xff] %v2207
    %2409 = vst [vmem:[#allocation10 + $0x280] sm:$0xff] %v2211
    %2410 = vst [vmem:[#allocation10 + $0x288] sm:$0xff] %v2213
    %2411 = vst [vmem:[#allocation10 + $0x290] sm:$0xff] %v2215
    %2412 = vst [vmem:[#allocation10 + $0x298] sm:$0xff] %v2217
    %2413 = vst [vmem:[#allocation10 + $0x2a0] sm:$0xff] %v2221
    %2414 = vst [vmem:[#allocation10 + $0x2a8] sm:$0xff] %v2223
    %2415 = vst [vmem:[#allocation10 + $0x2b0] sm:$0xff] %v2225
    %2416 = vst [vmem:[#allocation10 + $0x2b8] sm:$0xff] %v2227
    %2417 = vst [vmem:[#allocation10 + $0x2c0] sm:$0xff] %v2231
    %2418 = vst [vmem:[#allocation10 + $0x2c8] sm:$0xff] %v2233
    %2419 = vst [vmem:[#allocation10 + $0x2d0] sm:$0xff] %v2235
    %2420 = vst [vmem:[#allocation10 + $0x2d8] sm:$0xff] %v2237
    %2421 = vst [vmem:[#allocation10 + $0x2e0] sm:$0xff] %v2241
    %2422 = vst [vmem:[#allocation10 + $0x2e8] sm:$0xff] %v2243
    %2423 = vst [vmem:[#allocation10 + $0x2f0] sm:$0xff] %v2245
    %2424 = vst [vmem:[#allocation10 + $0x2f8] sm:$0xff] %v2247
    %2425 = vst [vmem:[#allocation10 + $0x300] sm:$0xff] %v2251
    %2426 = vst [vmem:[#allocation10 + $0x308] sm:$0xff] %v2253
    %2427 = vst [vmem:[#allocation10 + $0x310] sm:$0xff] %v2255
    %2428 = vst [vmem:[#allocation10 + $0x318] sm:$0xff] %v2257
    %2429 = vst [vmem:[#allocation10 + $0x320] sm:$0xff] %v2261
    %2430 = vst [vmem:[#allocation10 + $0x328] sm:$0xff] %v2263
    %2431 = vst [vmem:[#allocation10 + $0x330] sm:$0xff] %v2265
    %2432 = vst [vmem:[#allocation10 + $0x338] sm:$0xff] %v2267
    %2433 = vst [vmem:[#allocation10 + $0x340] sm:$0xff] %v2271
    %2434 = vst [vmem:[#allocation10 + $0x348] sm:$0xff] %v2273
    %2435 = vst [vmem:[#allocation10 + $0x350] sm:$0xff] %v2275
    %2436 = vst [vmem:[#allocation10 + $0x358] sm:$0xff] %v2277
    %2437 = vst [vmem:[#allocation10 + $0x360] sm:$0xff] %v2281
    %2438 = vst [vmem:[#allocation10 + $0x368] sm:$0xff] %v2283
    %2439 = vst [vmem:[#allocation10 + $0x370] sm:$0xff] %v2285
    %2440 = vst [vmem:[#allocation10 + $0x378] sm:$0xff] %v2287
    %2441 = vst [vmem:[#allocation10 + $0x380] sm:$0xff] %v2291
    %2442 = vst [vmem:[#allocation10 + $0x388] sm:$0xff] %v2293
    %2443 = vst [vmem:[#allocation10 + $0x390] sm:$0xff] %v2295
    %2444 = vst [vmem:[#allocation10 + $0x398] sm:$0xff] %v2297
    %2445 = vst [vmem:[#allocation10 + $0x3a0] sm:$0xff] %v2301
    %2446 = vst [vmem:[#allocation10 + $0x3a8] sm:$0xff] %v2303
    %2447 = vst [vmem:[#allocation10 + $0x3b0] sm:$0xff] %v2305
    %2448 = vst [vmem:[#allocation10 + $0x3b8] sm:$0xff] %v2307
    %2449 = vst [vmem:[#allocation10 + $0x3c0] sm:$0xff] %v2311
    %2450 = vst [vmem:[#allocation10 + $0x3c8] sm:$0xff] %v2313
    %2451 = vst [vmem:[#allocation10 + $0x3d0] sm:$0xff] %v2315
    %2452 = vst [vmem:[#allocation10 + $0x3d8] sm:$0xff] %v2317
    %2453 = vst [vmem:[#allocation10 + $0x3e0] sm:$0xff] %v2321
    %2454 = vst [vmem:[#allocation10 + $0x3e8] sm:$0xff] %v2323
    %2455 = vst [vmem:[#allocation10 + $0x3f0] sm:$0xff] %v2325
    %2456 = vst [vmem:[#allocation10 + $0x3f8] sm:$0xff] %v2327
    // Predicated region
    $region46: #{tpu_custom_call.1} parent=1 // pred_check
      _
    $region47: #{tpu_custom_call.1} parent=1 // pred_check_branch
      %2458 = sbr.rel (0) target = $region49
    $region48: #{tpu_custom_call.1} parent=1 // pred_region
      %s2460 = ssub.s32 16384, 16384
      %2461 = vsyncadd [#allocation4], %s2460
      %s2462 = sshll.u32 [#allocation10], 4
      %s2463 = int_to_ptr.vmem [resolvable:$true] %s2462
      %2468 = dma.vmem_to_hbm [thread:$0]  %s2463, 16384, %s7, [#allocation4], 256, 256, 16
    $region49: #{tpu_custom_call.1} parent=1 // pred_fallthru
      _
    // Predicated region
    $region50: #{tpu_custom_call.1} parent=1 // pred_check
      _
    $region51: #{tpu_custom_call.1} parent=1 // pred_check_branch
      %2470 = sbr.rel (0) target = $region53
    $region52: #{tpu_custom_call.1} parent=1 // pred_region
      %2471 = dma.done [#allocation4], 16384
    $region53: #{tpu_custom_call.1} parent=1 // pred_fallthru
      _
    %2472 = vsyncpa [#allocation3], 1
    %2473 = vsyncpa [#allocation6], 1
    %2474 = vsyncpa [#allocation9], 1
    %2475 = vsyncpa [#allocation4], 1

</llo_original>
